<compile_context>
chip_gen: v7x
topology: tpu7x:2x2x1
jax: 0.10.0
libtpu: 0.0.40
codegen_flags: <defaults>
</compile_context>

<pallas_src>
import functools

import jax
import jax.numpy as jnp
from jax.experimental import pallas as pl
from jax.experimental.pallas import tpu as pltpu

EPS = 1e-5      # nn.GroupNorm default eps
K = 7           # conv kernel size
PAD = 3         # conv padding
STRIDE = 2      # conv stride


def _round_up(x, m):
    return (x + m - 1) // m * m


def _phase_split_flat(x, flat_len):
    """Zero-pad by PAD, split into the 4 stride-2 phases, flatten spatial (pure XLA layout).

    x: (N, C, H, W) -> (N, 4*C, flat_len); row g*C + c (g = 2*a + b), flat column u*Wp + v
    holds xpad[n, c, 2*u + a, 2*v + b]; the flat tail [Hp*Wp, flat_len) is zero."""
    N, C, H, W = x.shape
    Hp, Wp = (H + 2 * PAD) // 2, (W + 2 * PAD) // 2
    xpad = jnp.pad(x, ((0, 0), (0, 0), (PAD, PAD), (PAD, PAD)))
    xph = xpad.reshape(N, C, Hp, 2, Wp, 2)
    xph = jnp.transpose(xph, (0, 3, 5, 1, 2, 4)).reshape(N, 4 * C, Hp * Wp)
    return jnp.pad(xph, ((0, 0), (0, 0), (0, flat_len - Hp * Wp)))


def downsample_kernel(x_ref, w_ref, mask_ref, o_ref, norm_ref, col_ref,
                      *, cin, wp, sp_img, sp_pad, n_pix):
    """One grid step = B images (batch-folded for lane density).

    x_ref:    (B, 4*Cin, L)      zero-padded, phase-split, flattened input (input dtype).
    w_ref:    (Cout, K*K*Cin)    conv weight, columns ordered (ky, kx, cin). Resident.
    mask_ref: (1, 4, L)          1.0 at real-pixel positions of each padded phase plane.
    o_ref:    (B, Cout, sp_pad)  output, channel-major, Wp-strided flattened spatial.
    norm_ref: (B, 4*Cin, L)      scratch: normalized padded phase planes (matmul dtype).
    col_ref:  (K*K*Cin, B*sp_pad) scratch: transposed im2col patch matrix (matmul dtype).
    """
    B = x_ref.shape[0]
    xv = x_ref[...].astype(jnp.float32)                     # (B, 4*Cin, L)

    # ---- 1. GroupNorm(num_groups=C, affine=False): single-pass per-(image, channel)
    #         E[x]/E[x^2] in f32.  Pad positions are zero so they do not perturb the sums;
    #         divide by the true pixel count H*W.  All reductions are over the lane axis.
    sum1 = jnp.zeros((B, cin, 1), jnp.float32)
    sum2 = jnp.zeros((B, cin, 1), jnp.float32)
    for g in range(4):
        xg = xv[:, g * cin:(g + 1) * cin, :]
        sum1 = sum1 + jnp.sum(xg, axis=-1, keepdims=True)
        sum2 = sum2 + jnp.sum(xg * xg, axis=-1, keepdims=True)
    mean = sum1 * (1.0 / n_pix)
    var = jnp.maximum(sum2 * (1.0 / n_pix) - mean * mean, 0.0)   # biased variance
    inv_std = jax.lax.rsqrt(var + EPS)                            # (B, Cin, 1)

    # ---- 2. Normalize into the padded phase planes.  The mask keeps the conv's zero
    #         padding exact ((0 - mean)*inv would otherwise leak into border taps).
    #         Lane-dense full-width stores; result cast to the (bf16) matmul dtype.
    for g in range(4):
        xg = xv[:, g * cin:(g + 1) * cin, :]                 # (B, Cin, L)
        mg = mask_ref[:, g:g + 1, :]                         # (1, 1, L) broadcast
        norm_ref[:, g * cin:(g + 1) * cin, :] = (
            (xg - mean) * inv_std * mg).astype(norm_ref.dtype)

    # ---- 3. Transposed im2col.  With the phase split + Wp-strided flattening, tap
    #         (ky, kx) of the stride-2 conv is the contiguous slice [off, off + sp_img)
    #         of phase plane g = 2*(ky%2) + (kx%2) with off = (ky//2)*Wp + (kx//2):
    #         each write is Cin lane-dense rows of width sp_img -- no reshapes, no
    #         transposes, no masked narrow stores.
    for ky in range(K):
        a, qy = ky % 2, ky // 2
        for kx in range(K):
            b, qx = kx % 2, kx // 2
            g = 2 * a + b
            t = ky * K + kx
            off = qy * wp + qx
            for img in range(B):
                col_ref[t * cin:(t + 1) * cin,
                        img * sp_pad: img * sp_pad + sp_img] = (
                    norm_ref[img, g * cin:(g + 1) * cin, off: off + sp_img])

    # ---- 4. One canonical MXU matmul: (Cout, K*K*Cin) @ (K*K*Cin, B*sp_pad),
    #         bf16 operands, f32 accumulation, lane-dense (multiple-of-128) result.
    acc = jnp.dot(w_ref[...], col_ref[...], preferred_element_type=jnp.float32)
    for img in range(B):
        o_ref[img] = acc[:, img * sp_pad:(img + 1) * sp_pad].astype(o_ref.dtype)


def downsample_module(x_nchw, w_oihw, *, matmul_dtype=jnp.bfloat16):
    """Forward pass of DownSample. x_nchw: (N, Cin, H, W); w_oihw: (Cout, Cin, 7, 7)."""
    N, Cin, H, W = x_nchw.shape
    Cout = w_oihw.shape[0]
    assert w_oihw.shape == (Cout, Cin, K, K)
    assert H % 2 == 0 and W % 2 == 0, "even spatial dims assumed for the phase split"
    Hh, Wh = H // 2, W // 2                      # conv output H, W
    Hp, Wp = Hh + PAD, Wh + PAD                  # padded phase-plane dims
    flat_len = _round_up(Hp * Wp + PAD, 128)     # flat plane length (+3 slack for max tap shift)
    sp_img = Hh * Wp                             # Wp-strided flat output extent per image
    sp_pad = _round_up(sp_img, 128)              # 128-aligned per-image column stride
    R = K * K * Cin

    # Fold two images per grid step when one image is lane-sparse (<128 output columns).
    b_step = 2 if (sp_img < 128 and N % 2 == 0) else 1
    n_steps = N // b_step
    assert N % b_step == 0

    # Wrapper-side layout plumbing (pure XLA): pad + phase-split + flatten; pad mask.
    x_ph = _phase_split_flat(x_nchw, flat_len)                                       # (N, 4*Cin, L)
    mask = _phase_split_flat(jnp.ones((1, 1, H, W), jnp.float32), flat_len)          # (1, 4, L)
    # Weight repack: (Cout, Cin, K, K) -> (Cout, K*K*Cin), column order (ky, kx, cin).
    w_mat = jnp.transpose(w_oihw, (0, 2, 3, 1)).reshape(Cout, R).astype(matmul_dtype)

    kern = functools.partial(downsample_kernel, cin=Cin, wp=Wp,
                             sp_img=sp_img, sp_pad=sp_pad, n_pix=H * W)

    out = pl.pallas_call(
        kern,
        out_shape=jax.ShapeDtypeStruct((N, Cout, sp_pad), x_nchw.dtype),
        grid_spec=pltpu.PrefetchScalarGridSpec(
            num_scalar_prefetch=0,
            grid=(n_steps,),
            in_specs=[
                pl.BlockSpec((b_step, 4 * Cin, flat_len), lambda n: (n, 0, 0)),
                pl.BlockSpec((Cout, R), lambda n: (0, 0)),         # weights stay resident
                pl.BlockSpec((1, 4, flat_len), lambda n: (0, 0, 0)),  # pad mask, resident
            ],
            out_specs=pl.BlockSpec((b_step, Cout, sp_pad), lambda n: (n, 0, 0)),
            scratch_shapes=[
                pltpu.VMEM((b_step, 4 * Cin, flat_len), matmul_dtype),  # normalized planes
                pltpu.VMEM((R, b_step * sp_pad), matmul_dtype),         # transposed im2col
            ],
        ),
        compiler_params=pltpu.CompilerParams(dimension_semantics=("parallel",)),
    )(x_ph, w_mat, mask)

    # Free-ish cleanup: drop the 128-pad columns and the Wp-stride filler columns.
    out = out[:, :, :sp_img].reshape(N, Cout, Hh, Wp)[:, :, :, :Wh]
    return out


def reference(x_nchw, w_oihw):
    """Pure-JAX reference matching the PyTorch DownSample semantics (all f32)."""
    mean = jnp.mean(x_nchw, axis=(2, 3), keepdims=True)
    var = jnp.mean(jnp.square(x_nchw - mean), axis=(2, 3), keepdims=True)
    xn = (x_nchw - mean) / jnp.sqrt(var + EPS)
    return jax.lax.conv_general_dilated(
        xn, w_oihw, window_strides=(STRIDE, STRIDE),
        padding=((PAD, PAD), (PAD, PAD)),
        dimension_numbers=("NCHW", "OIHW", "NCHW"))


if __name__ == "__main__":
    N, Cin, Cout, H, W = 2, 4, 8, 16, 16

    key = jax.random.PRNGKey(0)
    kx, kw = jax.random.split(key)
    x = jax.random.normal(kx, (N, Cin, H, W), dtype=jnp.float32)
    # Synthetic conv weights (shape from nn.Conv2d(Cin, Cout, 7, stride=2, bias=False)).
    w = jax.random.normal(kw, (Cout, Cin, K, K), dtype=jnp.float32) * 0.05

    out = jax.block_until_ready(downsample_module(x, w))
    ref = jax.block_until_ready(reference(x, w))

    assert out.shape == (N, Cout, H // 2, W // 2), out.shape
    # bf16 MXU operands with f32 accumulation -> tolerance loosened vs a pure-f32 check.
    assert jnp.allclose(out, ref, atol=3e-2, rtol=3e-2), float(jnp.max(jnp.abs(out - ref)))
    print("KERNEL_OK")
</pallas_src>

<mosaic_0001>
module attributes {stable_mosaic.version = 11 : i64} {
  func.func @downsample_kernel(%arg0: i32, %arg1: memref<2x16x128xf32, #tpu.memory_space<vmem>>, %arg2: memref<8x196xbf16, #tpu.memory_space<vmem>>, %arg3: memref<1x4x128xf32, #tpu.memory_space<vmem>>, %arg4: memref<2x8x128xf32, #tpu.memory_space<vmem>>, %arg5: memref<2x16x128xbf16, #tpu.memory_space<vmem>>, %arg6: memref<196x256xbf16, #tpu.memory_space<vmem>>) attributes {dimension_semantics = [#tpu.dimension_semantics<parallel>], iteration_bounds = array<i64: 1>, scalar_prefetch = 0 : i64, scratch_operands = 2 : i64, tpu.core_type = #tpu.core_type<tc>, window_params = [{transform_indices = @transform_0, window_bounds = array<i64: 2, 16, 128>}, {pipeline_mode = #tpu.pipeline_mode<synchronous>, transform_indices = @transform_1, window_bounds = array<i64: 8, 196>}, {pipeline_mode = #tpu.pipeline_mode<synchronous>, transform_indices = @transform_2, window_bounds = array<i64: 1, 4, 128>}, {transform_indices = @transform_3, window_bounds = array<i64: 2, 8, 128>}]} {
    %c0 = arith.constant 0 : index
    %c0_0 = arith.constant 0 : index
    %c0_1 = arith.constant 0 : index
    %0 = vector.load %arg1[%c0, %c0_0, %c0_1] : memref<2x16x128xf32, #tpu.memory_space<vmem>>, vector<2x16x128xf32>
    %cst = arith.constant 0.000000e+00 : f32
    %1 = vector.broadcast %cst : f32 to vector<2x4x1xf32>
    %cst_2 = arith.constant 0.000000e+00 : f32
    %2 = vector.broadcast %cst_2 : f32 to vector<2x4x1xf32>
    %3 = vector.extract_strided_slice %0 {offsets = [0, 0, 0], sizes = [2, 4, 128], strides = [1, 1, 1]} : vector<2x16x128xf32> to vector<2x4x128xf32>
    %cst_3 = arith.constant dense<0.000000e+00> : vector<2x4xf32>
    %4 = vector.multi_reduction <add>, %3, %cst_3 [2] : vector<2x4x128xf32> to vector<2x4xf32>
    %5 = vector.shape_cast %4 : vector<2x4xf32> to vector<2x4x1xf32>
    %6 = arith.addf %1, %5 : vector<2x4x1xf32>
    %7 = arith.mulf %3, %3 : vector<2x4x128xf32>
    %cst_4 = arith.constant dense<0.000000e+00> : vector<2x4xf32>
    %8 = vector.multi_reduction <add>, %7, %cst_4 [2] : vector<2x4x128xf32> to vector<2x4xf32>
    %9 = vector.shape_cast %8 : vector<2x4xf32> to vector<2x4x1xf32>
    %10 = arith.addf %2, %9 : vector<2x4x1xf32>
    %11 = vector.extract_strided_slice %0 {offsets = [0, 4, 0], sizes = [2, 4, 128], strides = [1, 1, 1]} : vector<2x16x128xf32> to vector<2x4x128xf32>
    %cst_5 = arith.constant dense<0.000000e+00> : vector<2x4xf32>
    %12 = vector.multi_reduction <add>, %11, %cst_5 [2] : vector<2x4x128xf32> to vector<2x4xf32>
    %13 = vector.shape_cast %12 : vector<2x4xf32> to vector<2x4x1xf32>
    %14 = arith.addf %6, %13 : vector<2x4x1xf32>
    %15 = arith.mulf %11, %11 : vector<2x4x128xf32>
    %cst_6 = arith.constant dense<0.000000e+00> : vector<2x4xf32>
    %16 = vector.multi_reduction <add>, %15, %cst_6 [2] : vector<2x4x128xf32> to vector<2x4xf32>
    %17 = vector.shape_cast %16 : vector<2x4xf32> to vector<2x4x1xf32>
    %18 = arith.addf %10, %17 : vector<2x4x1xf32>
    %19 = vector.extract_strided_slice %0 {offsets = [0, 8, 0], sizes = [2, 4, 128], strides = [1, 1, 1]} : vector<2x16x128xf32> to vector<2x4x128xf32>
    %cst_7 = arith.constant dense<0.000000e+00> : vector<2x4xf32>
    %20 = vector.multi_reduction <add>, %19, %cst_7 [2] : vector<2x4x128xf32> to vector<2x4xf32>
    %21 = vector.shape_cast %20 : vector<2x4xf32> to vector<2x4x1xf32>
    %22 = arith.addf %14, %21 : vector<2x4x1xf32>
    %23 = arith.mulf %19, %19 : vector<2x4x128xf32>
    %cst_8 = arith.constant dense<0.000000e+00> : vector<2x4xf32>
    %24 = vector.multi_reduction <add>, %23, %cst_8 [2] : vector<2x4x128xf32> to vector<2x4xf32>
    %25 = vector.shape_cast %24 : vector<2x4xf32> to vector<2x4x1xf32>
    %26 = arith.addf %18, %25 : vector<2x4x1xf32>
    %27 = vector.extract_strided_slice %0 {offsets = [0, 12, 0], sizes = [2, 4, 128], strides = [1, 1, 1]} : vector<2x16x128xf32> to vector<2x4x128xf32>
    %cst_9 = arith.constant dense<0.000000e+00> : vector<2x4xf32>
    %28 = vector.multi_reduction <add>, %27, %cst_9 [2] : vector<2x4x128xf32> to vector<2x4xf32>
    %29 = vector.shape_cast %28 : vector<2x4xf32> to vector<2x4x1xf32>
    %30 = arith.addf %22, %29 : vector<2x4x1xf32>
    %31 = arith.mulf %27, %27 : vector<2x4x128xf32>
    %cst_10 = arith.constant dense<0.000000e+00> : vector<2x4xf32>
    %32 = vector.multi_reduction <add>, %31, %cst_10 [2] : vector<2x4x128xf32> to vector<2x4xf32>
    %33 = vector.shape_cast %32 : vector<2x4xf32> to vector<2x4x1xf32>
    %34 = arith.addf %26, %33 : vector<2x4x1xf32>
    %cst_11 = arith.constant 3.906250e-03 : f32
    %35 = vector.broadcast %cst_11 : f32 to vector<2x4x1xf32>
    %36 = arith.mulf %30, %35 : vector<2x4x1xf32>
    %cst_12 = arith.constant 3.906250e-03 : f32
    %37 = vector.broadcast %cst_12 : f32 to vector<2x4x1xf32>
    %38 = arith.mulf %34, %37 : vector<2x4x1xf32>
    %39 = arith.mulf %36, %36 : vector<2x4x1xf32>
    %40 = arith.subf %38, %39 : vector<2x4x1xf32>
    %cst_13 = arith.constant 0.000000e+00 : f32
    %41 = vector.broadcast %cst_13 : f32 to vector<2x4x1xf32>
    %42 = arith.maximumf %40, %41 : vector<2x4x1xf32>
    %cst_14 = arith.constant 9.99999974E-6 : f32
    %43 = vector.broadcast %cst_14 : f32 to vector<2x4x1xf32>
    %44 = arith.addf %42, %43 : vector<2x4x1xf32>
    %45 = math.rsqrt %44 : vector<2x4x1xf32>
    %46 = vector.extract_strided_slice %0 {offsets = [0, 0, 0], sizes = [2, 4, 128], strides = [1, 1, 1]} : vector<2x16x128xf32> to vector<2x4x128xf32>
    %c0_15 = arith.constant 0 : index
    %c0_16 = arith.constant 0 : index
    %c0_17 = arith.constant 0 : index
    %47 = vector.load %arg3[%c0_15, %c0_16, %c0_17] : memref<1x4x128xf32, #tpu.memory_space<vmem>>, vector<1x1x128xf32>
    %48 = vector.broadcast %36 : vector<2x4x1xf32> to vector<2x4x128xf32>
    %49 = arith.subf %46, %48 : vector<2x4x128xf32>
    %50 = vector.broadcast %45 : vector<2x4x1xf32> to vector<2x4x128xf32>
    %51 = arith.mulf %49, %50 : vector<2x4x128xf32>
    %52 = vector.broadcast %47 : vector<1x1x128xf32> to vector<2x4x128xf32>
    %53 = arith.mulf %51, %52 : vector<2x4x128xf32>
    %54 = arith.truncf %53 : vector<2x4x128xf32> to vector<2x4x128xbf16>
    %c0_18 = arith.constant 0 : index
    %c0_19 = arith.constant 0 : index
    %c0_20 = arith.constant 0 : index
    %55 = vector.load %arg5[%c0_18, %c0_19, %c0_20] : memref<2x16x128xbf16, #tpu.memory_space<vmem>>, vector<2x4x128xbf16>
    tpu.vector_store %arg5[%c0_18, %c0_19, %c0_20], %54 {strides = array<i32>} : memref<2x16x128xbf16, #tpu.memory_space<vmem>>, vector<2x4x128xbf16>,
    %56 = vector.extract_strided_slice %0 {offsets = [0, 4, 0], sizes = [2, 4, 128], strides = [1, 1, 1]} : vector<2x16x128xf32> to vector<2x4x128xf32>
    %c0_21 = arith.constant 0 : index
    %c1 = arith.constant 1 : index
    %c0_22 = arith.constant 0 : index
    %57 = vector.load %arg3[%c0_21, %c1, %c0_22] : memref<1x4x128xf32, #tpu.memory_space<vmem>>, vector<1x1x128xf32>
    %58 = vector.broadcast %36 : vector<2x4x1xf32> to vector<2x4x128xf32>
    %59 = arith.subf %56, %58 : vector<2x4x128xf32>
    %60 = vector.broadcast %45 : vector<2x4x1xf32> to vector<2x4x128xf32>
    %61 = arith.mulf %59, %60 : vector<2x4x128xf32>
    %62 = vector.broadcast %57 : vector<1x1x128xf32> to vector<2x4x128xf32>
    %63 = arith.mulf %61, %62 : vector<2x4x128xf32>
    %64 = arith.truncf %63 : vector<2x4x128xf32> to vector<2x4x128xbf16>
    %c0_23 = arith.constant 0 : index
    %c4 = arith.constant 4 : index
    %c0_24 = arith.constant 0 : index
    %65 = vector.load %arg5[%c0_23, %c4, %c0_24] : memref<2x16x128xbf16, #tpu.memory_space<vmem>>, vector<2x4x128xbf16>
    tpu.vector_store %arg5[%c0_23, %c4, %c0_24], %64 {strides = array<i32>} : memref<2x16x128xbf16, #tpu.memory_space<vmem>>, vector<2x4x128xbf16>,
    %66 = vector.extract_strided_slice %0 {offsets = [0, 8, 0], sizes = [2, 4, 128], strides = [1, 1, 1]} : vector<2x16x128xf32> to vector<2x4x128xf32>
    %c0_25 = arith.constant 0 : index
    %c2 = arith.constant 2 : index
    %c0_26 = arith.constant 0 : index
    %67 = vector.load %arg3[%c0_25, %c2, %c0_26] : memref<1x4x128xf32, #tpu.memory_space<vmem>>, vector<1x1x128xf32>
    %68 = vector.broadcast %36 : vector<2x4x1xf32> to vector<2x4x128xf32>
    %69 = arith.subf %66, %68 : vector<2x4x128xf32>
    %70 = vector.broadcast %45 : vector<2x4x1xf32> to vector<2x4x128xf32>
    %71 = arith.mulf %69, %70 : vector<2x4x128xf32>
    %72 = vector.broadcast %67 : vector<1x1x128xf32> to vector<2x4x128xf32>
    %73 = arith.mulf %71, %72 : vector<2x4x128xf32>
    %74 = arith.truncf %73 : vector<2x4x128xf32> to vector<2x4x128xbf16>
    %c0_27 = arith.constant 0 : index
    %c8 = arith.constant 8 : index
    %c0_28 = arith.constant 0 : index
    %75 = vector.load %arg5[%c0_27, %c8, %c0_28] : memref<2x16x128xbf16, #tpu.memory_space<vmem>>, vector<2x4x128xbf16>
    tpu.vector_store %arg5[%c0_27, %c8, %c0_28], %74 {strides = array<i32>} : memref<2x16x128xbf16, #tpu.memory_space<vmem>>, vector<2x4x128xbf16>,
    %76 = vector.extract_strided_slice %0 {offsets = [0, 12, 0], sizes = [2, 4, 128], strides = [1, 1, 1]} : vector<2x16x128xf32> to vector<2x4x128xf32>
    %c0_29 = arith.constant 0 : index
    %c3 = arith.constant 3 : index
    %c0_30 = arith.constant 0 : index
    %77 = vector.load %arg3[%c0_29, %c3, %c0_30] : memref<1x4x128xf32, #tpu.memory_space<vmem>>, vector<1x1x128xf32>
    %78 = vector.broadcast %36 : vector<2x4x1xf32> to vector<2x4x128xf32>
    %79 = arith.subf %76, %78 : vector<2x4x128xf32>
    %80 = vector.broadcast %45 : vector<2x4x1xf32> to vector<2x4x128xf32>
    %81 = arith.mulf %79, %80 : vector<2x4x128xf32>
    %82 = vector.broadcast %77 : vector<1x1x128xf32> to vector<2x4x128xf32>
    %83 = arith.mulf %81, %82 : vector<2x4x128xf32>
    %84 = arith.truncf %83 : vector<2x4x128xf32> to vector<2x4x128xbf16>
    %c0_31 = arith.constant 0 : index
    %c12 = arith.constant 12 : index
    %c0_32 = arith.constant 0 : index
    %85 = vector.load %arg5[%c0_31, %c12, %c0_32] : memref<2x16x128xbf16, #tpu.memory_space<vmem>>, vector<2x4x128xbf16>
    tpu.vector_store %arg5[%c0_31, %c12, %c0_32], %84 {strides = array<i32>} : memref<2x16x128xbf16, #tpu.memory_space<vmem>>, vector<2x4x128xbf16>,
    %c0_33 = arith.constant 0 : index
    %c0_34 = arith.constant 0 : index
    %c0_35 = arith.constant 0 : index
    %86 = vector.load %arg5[%c0_33, %c0_34, %c0_35] : memref<2x16x128xbf16, #tpu.memory_space<vmem>>, vector<1x4x88xbf16>
    %87 = vector.shape_cast %86 : vector<1x4x88xbf16> to vector<4x88xbf16>
    %c0_36 = arith.constant 0 : index
    %c0_37 = arith.constant 0 : index
    %88 = vector.load %arg6[%c0_36, %c0_37] : memref<196x256xbf16, #tpu.memory_space<vmem>>, vector<4x88xbf16>
    tpu.vector_store %arg6[%c0_36, %c0_37], %87 {strides = array<i32>} : memref<196x256xbf16, #tpu.memory_space<vmem>>, vector<4x88xbf16>,
    %c1_38 = arith.constant 1 : index
    %c0_39 = arith.constant 0 : index
    %c0_40 = arith.constant 0 : index
    %89 = vector.load %arg5[%c1_38, %c0_39, %c0_40] : memref<2x16x128xbf16, #tpu.memory_space<vmem>>, vector<1x4x88xbf16>
    %90 = vector.shape_cast %89 : vector<1x4x88xbf16> to vector<4x88xbf16>
    %c0_41 = arith.constant 0 : index
    %c128 = arith.constant 128 : index
    %91 = vector.load %arg6[%c0_41, %c128] : memref<196x256xbf16, #tpu.memory_space<vmem>>, vector<4x88xbf16>
    tpu.vector_store %arg6[%c0_41, %c128], %90 {strides = array<i32>} : memref<196x256xbf16, #tpu.memory_space<vmem>>, vector<4x88xbf16>,
    %c0_42 = arith.constant 0 : index
    %c4_43 = arith.constant 4 : index
    %c0_44 = arith.constant 0 : index
    %92 = vector.load %arg5[%c0_42, %c4_43, %c0_44] : memref<2x16x128xbf16, #tpu.memory_space<vmem>>, vector<1x4x88xbf16>
    %93 = vector.shape_cast %92 : vector<1x4x88xbf16> to vector<4x88xbf16>
    %c4_45 = arith.constant 4 : index
    %c0_46 = arith.constant 0 : index
    %94 = vector.load %arg6[%c4_45, %c0_46] : memref<196x256xbf16, #tpu.memory_space<vmem>>, vector<4x88xbf16>
    tpu.vector_store %arg6[%c4_45, %c0_46], %93 {strides = array<i32>} : memref<196x256xbf16, #tpu.memory_space<vmem>>, vector<4x88xbf16>,
    %c1_47 = arith.constant 1 : index
    %c4_48 = arith.constant 4 : index
    %c0_49 = arith.constant 0 : index
    %95 = vector.load %arg5[%c1_47, %c4_48, %c0_49] : memref<2x16x128xbf16, #tpu.memory_space<vmem>>, vector<1x4x88xbf16>
    %96 = vector.shape_cast %95 : vector<1x4x88xbf16> to vector<4x88xbf16>
    %c4_50 = arith.constant 4 : index
    %c128_51 = arith.constant 128 : index
    %97 = vector.load %arg6[%c4_50, %c128_51] : memref<196x256xbf16, #tpu.memory_space<vmem>>, vector<4x88xbf16>
    tpu.vector_store %arg6[%c4_50, %c128_51], %96 {strides = array<i32>} : memref<196x256xbf16, #tpu.memory_space<vmem>>, vector<4x88xbf16>,
    %c0_52 = arith.constant 0 : index
    %c0_53 = arith.constant 0 : index
    %c1_54 = arith.constant 1 : index
    %98 = vector.load %arg5[%c0_52, %c0_53, %c1_54] : memref<2x16x128xbf16, #tpu.memory_space<vmem>>, vector<1x4x88xbf16>
    %99 = vector.shape_cast %98 : vector<1x4x88xbf16> to vector<4x88xbf16>
    %c8_55 = arith.constant 8 : index
    %c0_56 = arith.constant 0 : index
    %100 = vector.load %arg6[%c8_55, %c0_56] : memref<196x256xbf16, #tpu.memory_space<vmem>>, vector<4x88xbf16>
    tpu.vector_store %arg6[%c8_55, %c0_56], %99 {strides = array<i32>} : memref<196x256xbf16, #tpu.memory_space<vmem>>, vector<4x88xbf16>,
    %c1_57 = arith.constant 1 : index
    %c0_58 = arith.constant 0 : index
    %c1_59 = arith.constant 1 : index
    %101 = vector.load %arg5[%c1_57, %c0_58, %c1_59] : memref<2x16x128xbf16, #tpu.memory_space<vmem>>, vector<1x4x88xbf16>
    %102 = vector.shape_cast %101 : vector<1x4x88xbf16> to vector<4x88xbf16>
    %c8_60 = arith.constant 8 : index
    %c128_61 = arith.constant 128 : index
    %103 = vector.load %arg6[%c8_60, %c128_61] : memref<196x256xbf16, #tpu.memory_space<vmem>>, vector<4x88xbf16>
    tpu.vector_store %arg6[%c8_60, %c128_61], %102 {strides = array<i32>} : memref<196x256xbf16, #tpu.memory_space<vmem>>, vector<4x88xbf16>,
    %c0_62 = arith.constant 0 : index
    %c4_63 = arith.constant 4 : index
    %c1_64 = arith.constant 1 : index
    %104 = vector.load %arg5[%c0_62, %c4_63, %c1_64] : memref<2x16x128xbf16, #tpu.memory_space<vmem>>, vector<1x4x88xbf16>
    %105 = vector.shape_cast %104 : vector<1x4x88xbf16> to vector<4x88xbf16>
    %c12_65 = arith.constant 12 : index
    %c0_66 = arith.constant 0 : index
    %106 = vector.load %arg6[%c12_65, %c0_66] : memref<196x256xbf16, #tpu.memory_space<vmem>>, vector<4x88xbf16>
    tpu.vector_store %arg6[%c12_65, %c0_66], %105 {strides = array<i32>} : memref<196x256xbf16, #tpu.memory_space<vmem>>, vector<4x88xbf16>,
    %c1_67 = arith.constant 1 : index
    %c4_68 = arith.constant 4 : index
    %c1_69 = arith.constant 1 : index
    %107 = vector.load %arg5[%c1_67, %c4_68, %c1_69] : memref<2x16x128xbf16, #tpu.memory_space<vmem>>, vector<1x4x88xbf16>
    %108 = vector.shape_cast %107 : vector<1x4x88xbf16> to vector<4x88xbf16>
    %c12_70 = arith.constant 12 : index
    %c128_71 = arith.constant 128 : index
    %109 = vector.load %arg6[%c12_70, %c128_71] : memref<196x256xbf16, #tpu.memory_space<vmem>>, vector<4x88xbf16>
    tpu.vector_store %arg6[%c12_70, %c128_71], %108 {strides = array<i32>} : memref<196x256xbf16, #tpu.memory_space<vmem>>, vector<4x88xbf16>,
    %c0_72 = arith.constant 0 : index
    %c0_73 = arith.constant 0 : index
    %c2_74 = arith.constant 2 : index
    %110 = vector.load %arg5[%c0_72, %c0_73, %c2_74] : memref<2x16x128xbf16, #tpu.memory_space<vmem>>, vector<1x4x88xbf16>
    %111 = vector.shape_cast %110 : vector<1x4x88xbf16> to vector<4x88xbf16>
    %c16 = arith.constant 16 : index
    %c0_75 = arith.constant 0 : index
    %112 = vector.load %arg6[%c16, %c0_75] : memref<196x256xbf16, #tpu.memory_space<vmem>>, vector<4x88xbf16>
    tpu.vector_store %arg6[%c16, %c0_75], %111 {strides = array<i32>} : memref<196x256xbf16, #tpu.memory_space<vmem>>, vector<4x88xbf16>,
    %c1_76 = arith.constant 1 : index
    %c0_77 = arith.constant 0 : index
    %c2_78 = arith.constant 2 : index
    %113 = vector.load %arg5[%c1_76, %c0_77, %c2_78] : memref<2x16x128xbf16, #tpu.memory_space<vmem>>, vector<1x4x88xbf16>
    %114 = vector.shape_cast %113 : vector<1x4x88xbf16> to vector<4x88xbf16>
    %c16_79 = arith.constant 16 : index
    %c128_80 = arith.constant 128 : index
    %115 = vector.load %arg6[%c16_79, %c128_80] : memref<196x256xbf16, #tpu.memory_space<vmem>>, vector<4x88xbf16>
    tpu.vector_store %arg6[%c16_79, %c128_80], %114 {strides = array<i32>} : memref<196x256xbf16, #tpu.memory_space<vmem>>, vector<4x88xbf16>,
    %c0_81 = arith.constant 0 : index
    %c4_82 = arith.constant 4 : index
    %c2_83 = arith.constant 2 : index
    %116 = vector.load %arg5[%c0_81, %c4_82, %c2_83] : memref<2x16x128xbf16, #tpu.memory_space<vmem>>, vector<1x4x88xbf16>
    %117 = vector.shape_cast %116 : vector<1x4x88xbf16> to vector<4x88xbf16>
    %c20 = arith.constant 20 : index
    %c0_84 = arith.constant 0 : index
    %118 = vector.load %arg6[%c20, %c0_84] : memref<196x256xbf16, #tpu.memory_space<vmem>>, vector<4x88xbf16>
    tpu.vector_store %arg6[%c20, %c0_84], %117 {strides = array<i32>} : memref<196x256xbf16, #tpu.memory_space<vmem>>, vector<4x88xbf16>,
    %c1_85 = arith.constant 1 : index
    %c4_86 = arith.constant 4 : index
    %c2_87 = arith.constant 2 : index
    %119 = vector.load %arg5[%c1_85, %c4_86, %c2_87] : memref<2x16x128xbf16, #tpu.memory_space<vmem>>, vector<1x4x88xbf16>
    %120 = vector.shape_cast %119 : vector<1x4x88xbf16> to vector<4x88xbf16>
    %c20_88 = arith.constant 20 : index
    %c128_89 = arith.constant 128 : index
    %121 = vector.load %arg6[%c20_88, %c128_89] : memref<196x256xbf16, #tpu.memory_space<vmem>>, vector<4x88xbf16>
    tpu.vector_store %arg6[%c20_88, %c128_89], %120 {strides = array<i32>} : memref<196x256xbf16, #tpu.memory_space<vmem>>, vector<4x88xbf16>,
    %c0_90 = arith.constant 0 : index
    %c0_91 = arith.constant 0 : index
    %c3_92 = arith.constant 3 : index
    %122 = vector.load %arg5[%c0_90, %c0_91, %c3_92] : memref<2x16x128xbf16, #tpu.memory_space<vmem>>, vector<1x4x88xbf16>
    %123 = vector.shape_cast %122 : vector<1x4x88xbf16> to vector<4x88xbf16>
    %c24 = arith.constant 24 : index
    %c0_93 = arith.constant 0 : index
    %124 = vector.load %arg6[%c24, %c0_93] : memref<196x256xbf16, #tpu.memory_space<vmem>>, vector<4x88xbf16>
    tpu.vector_store %arg6[%c24, %c0_93], %123 {strides = array<i32>} : memref<196x256xbf16, #tpu.memory_space<vmem>>, vector<4x88xbf16>,
    %c1_94 = arith.constant 1 : index
    %c0_95 = arith.constant 0 : index
    %c3_96 = arith.constant 3 : index
    %125 = vector.load %arg5[%c1_94, %c0_95, %c3_96] : memref<2x16x128xbf16, #tpu.memory_space<vmem>>, vector<1x4x88xbf16>
    %126 = vector.shape_cast %125 : vector<1x4x88xbf16> to vector<4x88xbf16>
    %c24_97 = arith.constant 24 : index
    %c128_98 = arith.constant 128 : index
    %127 = vector.load %arg6[%c24_97, %c128_98] : memref<196x256xbf16, #tpu.memory_space<vmem>>, vector<4x88xbf16>
    tpu.vector_store %arg6[%c24_97, %c128_98], %126 {strides = array<i32>} : memref<196x256xbf16, #tpu.memory_space<vmem>>, vector<4x88xbf16>,
    %c0_99 = arith.constant 0 : index
    %c8_100 = arith.constant 8 : index
    %c0_101 = arith.constant 0 : index
    %128 = vector.load %arg5[%c0_99, %c8_100, %c0_101] : memref<2x16x128xbf16, #tpu.memory_space<vmem>>, vector<1x4x88xbf16>
    %129 = vector.shape_cast %128 : vector<1x4x88xbf16> to vector<4x88xbf16>
    %c28 = arith.constant 28 : index
    %c0_102 = arith.constant 0 : index
    %130 = vector.load %arg6[%c28, %c0_102] : memref<196x256xbf16, #tpu.memory_space<vmem>>, vector<4x88xbf16>
    tpu.vector_store %arg6[%c28, %c0_102], %129 {strides = array<i32>} : memref<196x256xbf16, #tpu.memory_space<vmem>>, vector<4x88xbf16>,
    %c1_103 = arith.constant 1 : index
    %c8_104 = arith.constant 8 : index
    %c0_105 = arith.constant 0 : index
    %131 = vector.load %arg5[%c1_103, %c8_104, %c0_105] : memref<2x16x128xbf16, #tpu.memory_space<vmem>>, vector<1x4x88xbf16>
    %132 = vector.shape_cast %131 : vector<1x4x88xbf16> to vector<4x88xbf16>
    %c28_106 = arith.constant 28 : index
    %c128_107 = arith.constant 128 : index
    %133 = vector.load %arg6[%c28_106, %c128_107] : memref<196x256xbf16, #tpu.memory_space<vmem>>, vector<4x88xbf16>
    tpu.vector_store %arg6[%c28_106, %c128_107], %132 {strides = array<i32>} : memref<196x256xbf16, #tpu.memory_space<vmem>>, vector<4x88xbf16>,
    %c0_108 = arith.constant 0 : index
    %c12_109 = arith.constant 12 : index
    %c0_110 = arith.constant 0 : index
    %134 = vector.load %arg5[%c0_108, %c12_109, %c0_110] : memref<2x16x128xbf16, #tpu.memory_space<vmem>>, vector<1x4x88xbf16>
    %135 = vector.shape_cast %134 : vector<1x4x88xbf16> to vector<4x88xbf16>
    %c32 = arith.constant 32 : index
    %c0_111 = arith.constant 0 : index
    %136 = vector.load %arg6[%c32, %c0_111] : memref<196x256xbf16, #tpu.memory_space<vmem>>, vector<4x88xbf16>
    tpu.vector_store %arg6[%c32, %c0_111], %135 {strides = array<i32>} : memref<196x256xbf16, #tpu.memory_space<vmem>>, vector<4x88xbf16>,
    %c1_112 = arith.constant 1 : index
    %c12_113 = arith.constant 12 : index
    %c0_114 = arith.constant 0 : index
    %137 = vector.load %arg5[%c1_112, %c12_113, %c0_114] : memref<2x16x128xbf16, #tpu.memory_space<vmem>>, vector<1x4x88xbf16>
    %138 = vector.shape_cast %137 : vector<1x4x88xbf16> to vector<4x88xbf16>
    %c32_115 = arith.constant 32 : index
    %c128_116 = arith.constant 128 : index
    %139 = vector.load %arg6[%c32_115, %c128_116] : memref<196x256xbf16, #tpu.memory_space<vmem>>, vector<4x88xbf16>
    tpu.vector_store %arg6[%c32_115, %c128_116], %138 {strides = array<i32>} : memref<196x256xbf16, #tpu.memory_space<vmem>>, vector<4x88xbf16>,
    %c0_117 = arith.constant 0 : index
    %c8_118 = arith.constant 8 : index
    %c1_119 = arith.constant 1 : index
    %140 = vector.load %arg5[%c0_117, %c8_118, %c1_119] : memref<2x16x128xbf16, #tpu.memory_space<vmem>>, vector<1x4x88xbf16>
    %141 = vector.shape_cast %140 : vector<1x4x88xbf16> to vector<4x88xbf16>
    %c36 = arith.constant 36 : index
    %c0_120 = arith.constant 0 : index
    %142 = vector.load %arg6[%c36, %c0_120] : memref<196x256xbf16, #tpu.memory_space<vmem>>, vector<4x88xbf16>
    tpu.vector_store %arg6[%c36, %c0_120], %141 {strides = array<i32>} : memref<196x256xbf16, #tpu.memory_space<vmem>>, vector<4x88xbf16>,
    %c1_121 = arith.constant 1 : index
    %c8_122 = arith.constant 8 : index
    %c1_123 = arith.constant 1 : index
    %143 = vector.load %arg5[%c1_121, %c8_122, %c1_123] : memref<2x16x128xbf16, #tpu.memory_space<vmem>>, vector<1x4x88xbf16>
    %144 = vector.shape_cast %143 : vector<1x4x88xbf16> to vector<4x88xbf16>
    %c36_124 = arith.constant 36 : index
    %c128_125 = arith.constant 128 : index
    %145 = vector.load %arg6[%c36_124, %c128_125] : memref<196x256xbf16, #tpu.memory_space<vmem>>, vector<4x88xbf16>
    tpu.vector_store %arg6[%c36_124, %c128_125], %144 {strides = array<i32>} : memref<196x256xbf16, #tpu.memory_space<vmem>>, vector<4x88xbf16>,
    %c0_126 = arith.constant 0 : index
    %c12_127 = arith.constant 12 : index
    %c1_128 = arith.constant 1 : index
    %146 = vector.load %arg5[%c0_126, %c12_127, %c1_128] : memref<2x16x128xbf16, #tpu.memory_space<vmem>>, vector<1x4x88xbf16>
    %147 = vector.shape_cast %146 : vector<1x4x88xbf16> to vector<4x88xbf16>
    %c40 = arith.constant 40 : index
    %c0_129 = arith.constant 0 : index
    %148 = vector.load %arg6[%c40, %c0_129] : memref<196x256xbf16, #tpu.memory_space<vmem>>, vector<4x88xbf16>
    tpu.vector_store %arg6[%c40, %c0_129], %147 {strides = array<i32>} : memref<196x256xbf16, #tpu.memory_space<vmem>>, vector<4x88xbf16>,
    %c1_130 = arith.constant 1 : index
    %c12_131 = arith.constant 12 : index
    %c1_132 = arith.constant 1 : index
    %149 = vector.load %arg5[%c1_130, %c12_131, %c1_132] : memref<2x16x128xbf16, #tpu.memory_space<vmem>>, vector<1x4x88xbf16>
    %150 = vector.shape_cast %149 : vector<1x4x88xbf16> to vector<4x88xbf16>
    %c40_133 = arith.constant 40 : index
    %c128_134 = arith.constant 128 : index
    %151 = vector.load %arg6[%c40_133, %c128_134] : memref<196x256xbf16, #tpu.memory_space<vmem>>, vector<4x88xbf16>
    tpu.vector_store %arg6[%c40_133, %c128_134], %150 {strides = array<i32>} : memref<196x256xbf16, #tpu.memory_space<vmem>>, vector<4x88xbf16>,
    %c0_135 = arith.constant 0 : index
    %c8_136 = arith.constant 8 : index
    %c2_137 = arith.constant 2 : index
    %152 = vector.load %arg5[%c0_135, %c8_136, %c2_137] : memref<2x16x128xbf16, #tpu.memory_space<vmem>>, vector<1x4x88xbf16>
    %153 = vector.shape_cast %152 : vector<1x4x88xbf16> to vector<4x88xbf16>
    %c44 = arith.constant 44 : index
    %c0_138 = arith.constant 0 : index
    %154 = vector.load %arg6[%c44, %c0_138] : memref<196x256xbf16, #tpu.memory_space<vmem>>, vector<4x88xbf16>
    tpu.vector_store %arg6[%c44, %c0_138], %153 {strides = array<i32>} : memref<196x256xbf16, #tpu.memory_space<vmem>>, vector<4x88xbf16>,
    %c1_139 = arith.constant 1 : index
    %c8_140 = arith.constant 8 : index
    %c2_141 = arith.constant 2 : index
    %155 = vector.load %arg5[%c1_139, %c8_140, %c2_141] : memref<2x16x128xbf16, #tpu.memory_space<vmem>>, vector<1x4x88xbf16>
    %156 = vector.shape_cast %155 : vector<1x4x88xbf16> to vector<4x88xbf16>
    %c44_142 = arith.constant 44 : index
    %c128_143 = arith.constant 128 : index
    %157 = vector.load %arg6[%c44_142, %c128_143] : memref<196x256xbf16, #tpu.memory_space<vmem>>, vector<4x88xbf16>
    tpu.vector_store %arg6[%c44_142, %c128_143], %156 {strides = array<i32>} : memref<196x256xbf16, #tpu.memory_space<vmem>>, vector<4x88xbf16>,
    %c0_144 = arith.constant 0 : index
    %c12_145 = arith.constant 12 : index
    %c2_146 = arith.constant 2 : index
    %158 = vector.load %arg5[%c0_144, %c12_145, %c2_146] : memref<2x16x128xbf16, #tpu.memory_space<vmem>>, vector<1x4x88xbf16>
    %159 = vector.shape_cast %158 : vector<1x4x88xbf16> to vector<4x88xbf16>
    %c48 = arith.constant 48 : index
    %c0_147 = arith.constant 0 : index
    %160 = vector.load %arg6[%c48, %c0_147] : memref<196x256xbf16, #tpu.memory_space<vmem>>, vector<4x88xbf16>
    tpu.vector_store %arg6[%c48, %c0_147], %159 {strides = array<i32>} : memref<196x256xbf16, #tpu.memory_space<vmem>>, vector<4x88xbf16>,
    %c1_148 = arith.constant 1 : index
    %c12_149 = arith.constant 12 : index
    %c2_150 = arith.constant 2 : index
    %161 = vector.load %arg5[%c1_148, %c12_149, %c2_150] : memref<2x16x128xbf16, #tpu.memory_space<vmem>>, vector<1x4x88xbf16>
    %162 = vector.shape_cast %161 : vector<1x4x88xbf16> to vector<4x88xbf16>
    %c48_151 = arith.constant 48 : index
    %c128_152 = arith.constant 128 : index
    %163 = vector.load %arg6[%c48_151, %c128_152] : memref<196x256xbf16, #tpu.memory_space<vmem>>, vector<4x88xbf16>
    tpu.vector_store %arg6[%c48_151, %c128_152], %162 {strides = array<i32>} : memref<196x256xbf16, #tpu.memory_space<vmem>>, vector<4x88xbf16>,
    %c0_153 = arith.constant 0 : index
    %c8_154 = arith.constant 8 : index
    %c3_155 = arith.constant 3 : index
    %164 = vector.load %arg5[%c0_153, %c8_154, %c3_155] : memref<2x16x128xbf16, #tpu.memory_space<vmem>>, vector<1x4x88xbf16>
    %165 = vector.shape_cast %164 : vector<1x4x88xbf16> to vector<4x88xbf16>
    %c52 = arith.constant 52 : index
    %c0_156 = arith.constant 0 : index
    %166 = vector.load %arg6[%c52, %c0_156] : memref<196x256xbf16, #tpu.memory_space<vmem>>, vector<4x88xbf16>
    tpu.vector_store %arg6[%c52, %c0_156], %165 {strides = array<i32>} : memref<196x256xbf16, #tpu.memory_space<vmem>>, vector<4x88xbf16>,
    %c1_157 = arith.constant 1 : index
    %c8_158 = arith.constant 8 : index
    %c3_159 = arith.constant 3 : index
    %167 = vector.load %arg5[%c1_157, %c8_158, %c3_159] : memref<2x16x128xbf16, #tpu.memory_space<vmem>>, vector<1x4x88xbf16>
    %168 = vector.shape_cast %167 : vector<1x4x88xbf16> to vector<4x88xbf16>
    %c52_160 = arith.constant 52 : index
    %c128_161 = arith.constant 128 : index
    %169 = vector.load %arg6[%c52_160, %c128_161] : memref<196x256xbf16, #tpu.memory_space<vmem>>, vector<4x88xbf16>
    tpu.vector_store %arg6[%c52_160, %c128_161], %168 {strides = array<i32>} : memref<196x256xbf16, #tpu.memory_space<vmem>>, vector<4x88xbf16>,
    %c0_162 = arith.constant 0 : index
    %c0_163 = arith.constant 0 : index
    %c11 = arith.constant 11 : index
    %170 = vector.load %arg5[%c0_162, %c0_163, %c11] : memref<2x16x128xbf16, #tpu.memory_space<vmem>>, vector<1x4x88xbf16>
    %171 = vector.shape_cast %170 : vector<1x4x88xbf16> to vector<4x88xbf16>
    %c56 = arith.constant 56 : index
    %c0_164 = arith.constant 0 : index
    %172 = vector.load %arg6[%c56, %c0_164] : memref<196x256xbf16, #tpu.memory_space<vmem>>, vector<4x88xbf16>
    tpu.vector_store %arg6[%c56, %c0_164], %171 {strides = array<i32>} : memref<196x256xbf16, #tpu.memory_space<vmem>>, vector<4x88xbf16>,
    %c1_165 = arith.constant 1 : index
    %c0_166 = arith.constant 0 : index
    %c11_167 = arith.constant 11 : index
    %173 = vector.load %arg5[%c1_165, %c0_166, %c11_167] : memref<2x16x128xbf16, #tpu.memory_space<vmem>>, vector<1x4x88xbf16>
    %174 = vector.shape_cast %173 : vector<1x4x88xbf16> to vector<4x88xbf16>
    %c56_168 = arith.constant 56 : index
    %c128_169 = arith.constant 128 : index
    %175 = vector.load %arg6[%c56_168, %c128_169] : memref<196x256xbf16, #tpu.memory_space<vmem>>, vector<4x88xbf16>
    tpu.vector_store %arg6[%c56_168, %c128_169], %174 {strides = array<i32>} : memref<196x256xbf16, #tpu.memory_space<vmem>>, vector<4x88xbf16>,
    %c0_170 = arith.constant 0 : index
    %c4_171 = arith.constant 4 : index
    %c11_172 = arith.constant 11 : index
    %176 = vector.load %arg5[%c0_170, %c4_171, %c11_172] : memref<2x16x128xbf16, #tpu.memory_space<vmem>>, vector<1x4x88xbf16>
    %177 = vector.shape_cast %176 : vector<1x4x88xbf16> to vector<4x88xbf16>
    %c60 = arith.constant 60 : index
    %c0_173 = arith.constant 0 : index
    %178 = vector.load %arg6[%c60, %c0_173] : memref<196x256xbf16, #tpu.memory_space<vmem>>, vector<4x88xbf16>
    tpu.vector_store %arg6[%c60, %c0_173], %177 {strides = array<i32>} : memref<196x256xbf16, #tpu.memory_space<vmem>>, vector<4x88xbf16>,
    %c1_174 = arith.constant 1 : index
    %c4_175 = arith.constant 4 : index
    %c11_176 = arith.constant 11 : index
    %179 = vector.load %arg5[%c1_174, %c4_175, %c11_176] : memref<2x16x128xbf16, #tpu.memory_space<vmem>>, vector<1x4x88xbf16>
    %180 = vector.shape_cast %179 : vector<1x4x88xbf16> to vector<4x88xbf16>
    %c60_177 = arith.constant 60 : index
    %c128_178 = arith.constant 128 : index
    %181 = vector.load %arg6[%c60_177, %c128_178] : memref<196x256xbf16, #tpu.memory_space<vmem>>, vector<4x88xbf16>
    tpu.vector_store %arg6[%c60_177, %c128_178], %180 {strides = array<i32>} : memref<196x256xbf16, #tpu.memory_space<vmem>>, vector<4x88xbf16>,
    %c0_179 = arith.constant 0 : index
    %c0_180 = arith.constant 0 : index
    %c12_181 = arith.constant 12 : index
    %182 = vector.load %arg5[%c0_179, %c0_180, %c12_181] : memref<2x16x128xbf16, #tpu.memory_space<vmem>>, vector<1x4x88xbf16>
    %183 = vector.shape_cast %182 : vector<1x4x88xbf16> to vector<4x88xbf16>
    %c64 = arith.constant 64 : index
    %c0_182 = arith.constant 0 : index
    %184 = vector.load %arg6[%c64, %c0_182] : memref<196x256xbf16, #tpu.memory_space<vmem>>, vector<4x88xbf16>
    tpu.vector_store %arg6[%c64, %c0_182], %183 {strides = array<i32>} : memref<196x256xbf16, #tpu.memory_space<vmem>>, vector<4x88xbf16>,
    %c1_183 = arith.constant 1 : index
    %c0_184 = arith.constant 0 : index
    %c12_185 = arith.constant 12 : index
    %185 = vector.load %arg5[%c1_183, %c0_184, %c12_185] : memref<2x16x128xbf16, #tpu.memory_space<vmem>>, vector<1x4x88xbf16>
    %186 = vector.shape_cast %185 : vector<1x4x88xbf16> to vector<4x88xbf16>
    %c64_186 = arith.constant 64 : index
    %c128_187 = arith.constant 128 : index
    %187 = vector.load %arg6[%c64_186, %c128_187] : memref<196x256xbf16, #tpu.memory_space<vmem>>, vector<4x88xbf16>
    tpu.vector_store %arg6[%c64_186, %c128_187], %186 {strides = array<i32>} : memref<196x256xbf16, #tpu.memory_space<vmem>>, vector<4x88xbf16>,
    %c0_188 = arith.constant 0 : index
    %c4_189 = arith.constant 4 : index
    %c12_190 = arith.constant 12 : index
    %188 = vector.load %arg5[%c0_188, %c4_189, %c12_190] : memref<2x16x128xbf16, #tpu.memory_space<vmem>>, vector<1x4x88xbf16>
    %189 = vector.shape_cast %188 : vector<1x4x88xbf16> to vector<4x88xbf16>
    %c68 = arith.constant 68 : index
    %c0_191 = arith.constant 0 : index
    %190 = vector.load %arg6[%c68, %c0_191] : memref<196x256xbf16, #tpu.memory_space<vmem>>, vector<4x88xbf16>
    tpu.vector_store %arg6[%c68, %c0_191], %189 {strides = array<i32>} : memref<196x256xbf16, #tpu.memory_space<vmem>>, vector<4x88xbf16>,
    %c1_192 = arith.constant 1 : index
    %c4_193 = arith.constant 4 : index
    %c12_194 = arith.constant 12 : index
    %191 = vector.load %arg5[%c1_192, %c4_193, %c12_194] : memref<2x16x128xbf16, #tpu.memory_space<vmem>>, vector<1x4x88xbf16>
    %192 = vector.shape_cast %191 : vector<1x4x88xbf16> to vector<4x88xbf16>
    %c68_195 = arith.constant 68 : index
    %c128_196 = arith.constant 128 : index
    %193 = vector.load %arg6[%c68_195, %c128_196] : memref<196x256xbf16, #tpu.memory_space<vmem>>, vector<4x88xbf16>
    tpu.vector_store %arg6[%c68_195, %c128_196], %192 {strides = array<i32>} : memref<196x256xbf16, #tpu.memory_space<vmem>>, vector<4x88xbf16>,
    %c0_197 = arith.constant 0 : index
    %c0_198 = arith.constant 0 : index
    %c13 = arith.constant 13 : index
    %194 = vector.load %arg5[%c0_197, %c0_198, %c13] : memref<2x16x128xbf16, #tpu.memory_space<vmem>>, vector<1x4x88xbf16>
    %195 = vector.shape_cast %194 : vector<1x4x88xbf16> to vector<4x88xbf16>
    %c72 = arith.constant 72 : index
    %c0_199 = arith.constant 0 : index
    %196 = vector.load %arg6[%c72, %c0_199] : memref<196x256xbf16, #tpu.memory_space<vmem>>, vector<4x88xbf16>
    tpu.vector_store %arg6[%c72, %c0_199], %195 {strides = array<i32>} : memref<196x256xbf16, #tpu.memory_space<vmem>>, vector<4x88xbf16>,
    %c1_200 = arith.constant 1 : index
    %c0_201 = arith.constant 0 : index
    %c13_202 = arith.constant 13 : index
    %197 = vector.load %arg5[%c1_200, %c0_201, %c13_202] : memref<2x16x128xbf16, #tpu.memory_space<vmem>>, vector<1x4x88xbf16>
    %198 = vector.shape_cast %197 : vector<1x4x88xbf16> to vector<4x88xbf16>
    %c72_203 = arith.constant 72 : index
    %c128_204 = arith.constant 128 : index
    %199 = vector.load %arg6[%c72_203, %c128_204] : memref<196x256xbf16, #tpu.memory_space<vmem>>, vector<4x88xbf16>
    tpu.vector_store %arg6[%c72_203, %c128_204], %198 {strides = array<i32>} : memref<196x256xbf16, #tpu.memory_space<vmem>>, vector<4x88xbf16>,
    %c0_205 = arith.constant 0 : index
    %c4_206 = arith.constant 4 : index
    %c13_207 = arith.constant 13 : index
    %200 = vector.load %arg5[%c0_205, %c4_206, %c13_207] : memref<2x16x128xbf16, #tpu.memory_space<vmem>>, vector<1x4x88xbf16>
    %201 = vector.shape_cast %200 : vector<1x4x88xbf16> to vector<4x88xbf16>
    %c76 = arith.constant 76 : index
    %c0_208 = arith.constant 0 : index
    %202 = vector.load %arg6[%c76, %c0_208] : memref<196x256xbf16, #tpu.memory_space<vmem>>, vector<4x88xbf16>
    tpu.vector_store %arg6[%c76, %c0_208], %201 {strides = array<i32>} : memref<196x256xbf16, #tpu.memory_space<vmem>>, vector<4x88xbf16>,
    %c1_209 = arith.constant 1 : index
    %c4_210 = arith.constant 4 : index
    %c13_211 = arith.constant 13 : index
    %203 = vector.load %arg5[%c1_209, %c4_210, %c13_211] : memref<2x16x128xbf16, #tpu.memory_space<vmem>>, vector<1x4x88xbf16>
    %204 = vector.shape_cast %203 : vector<1x4x88xbf16> to vector<4x88xbf16>
    %c76_212 = arith.constant 76 : index
    %c128_213 = arith.constant 128 : index
    %205 = vector.load %arg6[%c76_212, %c128_213] : memref<196x256xbf16, #tpu.memory_space<vmem>>, vector<4x88xbf16>
    tpu.vector_store %arg6[%c76_212, %c128_213], %204 {strides = array<i32>} : memref<196x256xbf16, #tpu.memory_space<vmem>>, vector<4x88xbf16>,
    %c0_214 = arith.constant 0 : index
    %c0_215 = arith.constant 0 : index
    %c14 = arith.constant 14 : index
    %206 = vector.load %arg5[%c0_214, %c0_215, %c14] : memref<2x16x128xbf16, #tpu.memory_space<vmem>>, vector<1x4x88xbf16>
    %207 = vector.shape_cast %206 : vector<1x4x88xbf16> to vector<4x88xbf16>
    %c80 = arith.constant 80 : index
    %c0_216 = arith.constant 0 : index
    %208 = vector.load %arg6[%c80, %c0_216] : memref<196x256xbf16, #tpu.memory_space<vmem>>, vector<4x88xbf16>
    tpu.vector_store %arg6[%c80, %c0_216], %207 {strides = array<i32>} : memref<196x256xbf16, #tpu.memory_space<vmem>>, vector<4x88xbf16>,
    %c1_217 = arith.constant 1 : index
    %c0_218 = arith.constant 0 : index
    %c14_219 = arith.constant 14 : index
    %209 = vector.load %arg5[%c1_217, %c0_218, %c14_219] : memref<2x16x128xbf16, #tpu.memory_space<vmem>>, vector<1x4x88xbf16>
    %210 = vector.shape_cast %209 : vector<1x4x88xbf16> to vector<4x88xbf16>
    %c80_220 = arith.constant 80 : index
    %c128_221 = arith.constant 128 : index
    %211 = vector.load %arg6[%c80_220, %c128_221] : memref<196x256xbf16, #tpu.memory_space<vmem>>, vector<4x88xbf16>
    tpu.vector_store %arg6[%c80_220, %c128_221], %210 {strides = array<i32>} : memref<196x256xbf16, #tpu.memory_space<vmem>>, vector<4x88xbf16>,
    %c0_222 = arith.constant 0 : index
    %c8_223 = arith.constant 8 : index
    %c11_224 = arith.constant 11 : index
    %212 = vector.load %arg5[%c0_222, %c8_223, %c11_224] : memref<2x16x128xbf16, #tpu.memory_space<vmem>>, vector<1x4x88xbf16>
    %213 = vector.shape_cast %212 : vector<1x4x88xbf16> to vector<4x88xbf16>
    %c84 = arith.constant 84 : index
    %c0_225 = arith.constant 0 : index
    %214 = vector.load %arg6[%c84, %c0_225] : memref<196x256xbf16, #tpu.memory_space<vmem>>, vector<4x88xbf16>
    tpu.vector_store %arg6[%c84, %c0_225], %213 {strides = array<i32>} : memref<196x256xbf16, #tpu.memory_space<vmem>>, vector<4x88xbf16>,
    %c1_226 = arith.constant 1 : index
    %c8_227 = arith.constant 8 : index
    %c11_228 = arith.constant 11 : index
    %215 = vector.load %arg5[%c1_226, %c8_227, %c11_228] : memref<2x16x128xbf16, #tpu.memory_space<vmem>>, vector<1x4x88xbf16>
    %216 = vector.shape_cast %215 : vector<1x4x88xbf16> to vector<4x88xbf16>
    %c84_229 = arith.constant 84 : index
    %c128_230 = arith.constant 128 : index
    %217 = vector.load %arg6[%c84_229, %c128_230] : memref<196x256xbf16, #tpu.memory_space<vmem>>, vector<4x88xbf16>
    tpu.vector_store %arg6[%c84_229, %c128_230], %216 {strides = array<i32>} : memref<196x256xbf16, #tpu.memory_space<vmem>>, vector<4x88xbf16>,
    %c0_231 = arith.constant 0 : index
    %c12_232 = arith.constant 12 : index
    %c11_233 = arith.constant 11 : index
    %218 = vector.load %arg5[%c0_231, %c12_232, %c11_233] : memref<2x16x128xbf16, #tpu.memory_space<vmem>>, vector<1x4x88xbf16>
    %219 = vector.shape_cast %218 : vector<1x4x88xbf16> to vector<4x88xbf16>
    %c88 = arith.constant 88 : index
    %c0_234 = arith.constant 0 : index
    %220 = vector.load %arg6[%c88, %c0_234] : memref<196x256xbf16, #tpu.memory_space<vmem>>, vector<4x88xbf16>
    tpu.vector_store %arg6[%c88, %c0_234], %219 {strides = array<i32>} : memref<196x256xbf16, #tpu.memory_space<vmem>>, vector<4x88xbf16>,
    %c1_235 = arith.constant 1 : index
    %c12_236 = arith.constant 12 : index
    %c11_237 = arith.constant 11 : index
    %221 = vector.load %arg5[%c1_235, %c12_236, %c11_237] : memref<2x16x128xbf16, #tpu.memory_space<vmem>>, vector<1x4x88xbf16>
    %222 = vector.shape_cast %221 : vector<1x4x88xbf16> to vector<4x88xbf16>
    %c88_238 = arith.constant 88 : index
    %c128_239 = arith.constant 128 : index
    %223 = vector.load %arg6[%c88_238, %c128_239] : memref<196x256xbf16, #tpu.memory_space<vmem>>, vector<4x88xbf16>
    tpu.vector_store %arg6[%c88_238, %c128_239], %222 {strides = array<i32>} : memref<196x256xbf16, #tpu.memory_space<vmem>>, vector<4x88xbf16>,
    %c0_240 = arith.constant 0 : index
    %c8_241 = arith.constant 8 : index
    %c12_242 = arith.constant 12 : index
    %224 = vector.load %arg5[%c0_240, %c8_241, %c12_242] : memref<2x16x128xbf16, #tpu.memory_space<vmem>>, vector<1x4x88xbf16>
    %225 = vector.shape_cast %224 : vector<1x4x88xbf16> to vector<4x88xbf16>
    %c92 = arith.constant 92 : index
    %c0_243 = arith.constant 0 : index
    %226 = vector.load %arg6[%c92, %c0_243] : memref<196x256xbf16, #tpu.memory_space<vmem>>, vector<4x88xbf16>
    tpu.vector_store %arg6[%c92, %c0_243], %225 {strides = array<i32>} : memref<196x256xbf16, #tpu.memory_space<vmem>>, vector<4x88xbf16>,
    %c1_244 = arith.constant 1 : index
    %c8_245 = arith.constant 8 : index
    %c12_246 = arith.constant 12 : index
    %227 = vector.load %arg5[%c1_244, %c8_245, %c12_246] : memref<2x16x128xbf16, #tpu.memory_space<vmem>>, vector<1x4x88xbf16>
    %228 = vector.shape_cast %227 : vector<1x4x88xbf16> to vector<4x88xbf16>
    %c92_247 = arith.constant 92 : index
    %c128_248 = arith.constant 128 : index
    %229 = vector.load %arg6[%c92_247, %c128_248] : memref<196x256xbf16, #tpu.memory_space<vmem>>, vector<4x88xbf16>
    tpu.vector_store %arg6[%c92_247, %c128_248], %228 {strides = array<i32>} : memref<196x256xbf16, #tpu.memory_space<vmem>>, vector<4x88xbf16>,
    %c0_249 = arith.constant 0 : index
    %c12_250 = arith.constant 12 : index
    %c12_251 = arith.constant 12 : index
    %230 = vector.load %arg5[%c0_249, %c12_250, %c12_251] : memref<2x16x128xbf16, #tpu.memory_space<vmem>>, vector<1x4x88xbf16>
    %231 = vector.shape_cast %230 : vector<1x4x88xbf16> to vector<4x88xbf16>
    %c96 = arith.constant 96 : index
    %c0_252 = arith.constant 0 : index
    %232 = vector.load %arg6[%c96, %c0_252] : memref<196x256xbf16, #tpu.memory_space<vmem>>, vector<4x88xbf16>
    tpu.vector_store %arg6[%c96, %c0_252], %231 {strides = array<i32>} : memref<196x256xbf16, #tpu.memory_space<vmem>>, vector<4x88xbf16>,
    %c1_253 = arith.constant 1 : index
    %c12_254 = arith.constant 12 : index
    %c12_255 = arith.constant 12 : index
    %233 = vector.load %arg5[%c1_253, %c12_254, %c12_255] : memref<2x16x128xbf16, #tpu.memory_space<vmem>>, vector<1x4x88xbf16>
    %234 = vector.shape_cast %233 : vector<1x4x88xbf16> to vector<4x88xbf16>
    %c96_256 = arith.constant 96 : index
    %c128_257 = arith.constant 128 : index
    %235 = vector.load %arg6[%c96_256, %c128_257] : memref<196x256xbf16, #tpu.memory_space<vmem>>, vector<4x88xbf16>
    tpu.vector_store %arg6[%c96_256, %c128_257], %234 {strides = array<i32>} : memref<196x256xbf16, #tpu.memory_space<vmem>>, vector<4x88xbf16>,
    %c0_258 = arith.constant 0 : index
    %c8_259 = arith.constant 8 : index
    %c13_260 = arith.constant 13 : index
    %236 = vector.load %arg5[%c0_258, %c8_259, %c13_260] : memref<2x16x128xbf16, #tpu.memory_space<vmem>>, vector<1x4x88xbf16>
    %237 = vector.shape_cast %236 : vector<1x4x88xbf16> to vector<4x88xbf16>
    %c100 = arith.constant 100 : index
    %c0_261 = arith.constant 0 : index
    %238 = vector.load %arg6[%c100, %c0_261] : memref<196x256xbf16, #tpu.memory_space<vmem>>, vector<4x88xbf16>
    tpu.vector_store %arg6[%c100, %c0_261], %237 {strides = array<i32>} : memref<196x256xbf16, #tpu.memory_space<vmem>>, vector<4x88xbf16>,
    %c1_262 = arith.constant 1 : index
    %c8_263 = arith.constant 8 : index
    %c13_264 = arith.constant 13 : index
    %239 = vector.load %arg5[%c1_262, %c8_263, %c13_264] : memref<2x16x128xbf16, #tpu.memory_space<vmem>>, vector<1x4x88xbf16>
    %240 = vector.shape_cast %239 : vector<1x4x88xbf16> to vector<4x88xbf16>
    %c100_265 = arith.constant 100 : index
    %c128_266 = arith.constant 128 : index
    %241 = vector.load %arg6[%c100_265, %c128_266] : memref<196x256xbf16, #tpu.memory_space<vmem>>, vector<4x88xbf16>
    tpu.vector_store %arg6[%c100_265, %c128_266], %240 {strides = array<i32>} : memref<196x256xbf16, #tpu.memory_space<vmem>>, vector<4x88xbf16>,
    %c0_267 = arith.constant 0 : index
    %c12_268 = arith.constant 12 : index
    %c13_269 = arith.constant 13 : index
    %242 = vector.load %arg5[%c0_267, %c12_268, %c13_269] : memref<2x16x128xbf16, #tpu.memory_space<vmem>>, vector<1x4x88xbf16>
    %243 = vector.shape_cast %242 : vector<1x4x88xbf16> to vector<4x88xbf16>
    %c104 = arith.constant 104 : index
    %c0_270 = arith.constant 0 : index
    %244 = vector.load %arg6[%c104, %c0_270] : memref<196x256xbf16, #tpu.memory_space<vmem>>, vector<4x88xbf16>
    tpu.vector_store %arg6[%c104, %c0_270], %243 {strides = array<i32>} : memref<196x256xbf16, #tpu.memory_space<vmem>>, vector<4x88xbf16>,
    %c1_271 = arith.constant 1 : index
    %c12_272 = arith.constant 12 : index
    %c13_273 = arith.constant 13 : index
    %245 = vector.load %arg5[%c1_271, %c12_272, %c13_273] : memref<2x16x128xbf16, #tpu.memory_space<vmem>>, vector<1x4x88xbf16>
    %246 = vector.shape_cast %245 : vector<1x4x88xbf16> to vector<4x88xbf16>
    %c104_274 = arith.constant 104 : index
    %c128_275 = arith.constant 128 : index
    %247 = vector.load %arg6[%c104_274, %c128_275] : memref<196x256xbf16, #tpu.memory_space<vmem>>, vector<4x88xbf16>
    tpu.vector_store %arg6[%c104_274, %c128_275], %246 {strides = array<i32>} : memref<196x256xbf16, #tpu.memory_space<vmem>>, vector<4x88xbf16>,
    %c0_276 = arith.constant 0 : index
    %c8_277 = arith.constant 8 : index
    %c14_278 = arith.constant 14 : index
    %248 = vector.load %arg5[%c0_276, %c8_277, %c14_278] : memref<2x16x128xbf16, #tpu.memory_space<vmem>>, vector<1x4x88xbf16>
    %249 = vector.shape_cast %248 : vector<1x4x88xbf16> to vector<4x88xbf16>
    %c108 = arith.constant 108 : index
    %c0_279 = arith.constant 0 : index
    %250 = vector.load %arg6[%c108, %c0_279] : memref<196x256xbf16, #tpu.memory_space<vmem>>, vector<4x88xbf16>
    tpu.vector_store %arg6[%c108, %c0_279], %249 {strides = array<i32>} : memref<196x256xbf16, #tpu.memory_space<vmem>>, vector<4x88xbf16>,
    %c1_280 = arith.constant 1 : index
    %c8_281 = arith.constant 8 : index
    %c14_282 = arith.constant 14 : index
    %251 = vector.load %arg5[%c1_280, %c8_281, %c14_282] : memref<2x16x128xbf16, #tpu.memory_space<vmem>>, vector<1x4x88xbf16>
    %252 = vector.shape_cast %251 : vector<1x4x88xbf16> to vector<4x88xbf16>
    %c108_283 = arith.constant 108 : index
    %c128_284 = arith.constant 128 : index
    %253 = vector.load %arg6[%c108_283, %c128_284] : memref<196x256xbf16, #tpu.memory_space<vmem>>, vector<4x88xbf16>
    tpu.vector_store %arg6[%c108_283, %c128_284], %252 {strides = array<i32>} : memref<196x256xbf16, #tpu.memory_space<vmem>>, vector<4x88xbf16>,
    %c0_285 = arith.constant 0 : index
    %c0_286 = arith.constant 0 : index
    %c22 = arith.constant 22 : index
    %254 = vector.load %arg5[%c0_285, %c0_286, %c22] : memref<2x16x128xbf16, #tpu.memory_space<vmem>>, vector<1x4x88xbf16>
    %255 = vector.shape_cast %254 : vector<1x4x88xbf16> to vector<4x88xbf16>
    %c112 = arith.constant 112 : index
    %c0_287 = arith.constant 0 : index
    %256 = vector.load %arg6[%c112, %c0_287] : memref<196x256xbf16, #tpu.memory_space<vmem>>, vector<4x88xbf16>
    tpu.vector_store %arg6[%c112, %c0_287], %255 {strides = array<i32>} : memref<196x256xbf16, #tpu.memory_space<vmem>>, vector<4x88xbf16>,
    %c1_288 = arith.constant 1 : index
    %c0_289 = arith.constant 0 : index
    %c22_290 = arith.constant 22 : index
    %257 = vector.load %arg5[%c1_288, %c0_289, %c22_290] : memref<2x16x128xbf16, #tpu.memory_space<vmem>>, vector<1x4x88xbf16>
    %258 = vector.shape_cast %257 : vector<1x4x88xbf16> to vector<4x88xbf16>
    %c112_291 = arith.constant 112 : index
    %c128_292 = arith.constant 128 : index
    %259 = vector.load %arg6[%c112_291, %c128_292] : memref<196x256xbf16, #tpu.memory_space<vmem>>, vector<4x88xbf16>
    tpu.vector_store %arg6[%c112_291, %c128_292], %258 {strides = array<i32>} : memref<196x256xbf16, #tpu.memory_space<vmem>>, vector<4x88xbf16>,
    %c0_293 = arith.constant 0 : index
    %c4_294 = arith.constant 4 : index
    %c22_295 = arith.constant 22 : index
    %260 = vector.load %arg5[%c0_293, %c4_294, %c22_295] : memref<2x16x128xbf16, #tpu.memory_space<vmem>>, vector<1x4x88xbf16>
    %261 = vector.shape_cast %260 : vector<1x4x88xbf16> to vector<4x88xbf16>
    %c116 = arith.constant 116 : index
    %c0_296 = arith.constant 0 : index
    %262 = vector.load %arg6[%c116, %c0_296] : memref<196x256xbf16, #tpu.memory_space<vmem>>, vector<4x88xbf16>
    tpu.vector_store %arg6[%c116, %c0_296], %261 {strides = array<i32>} : memref<196x256xbf16, #tpu.memory_space<vmem>>, vector<4x88xbf16>,
    %c1_297 = arith.constant 1 : index
    %c4_298 = arith.constant 4 : index
    %c22_299 = arith.constant 22 : index
    %263 = vector.load %arg5[%c1_297, %c4_298, %c22_299] : memref<2x16x128xbf16, #tpu.memory_space<vmem>>, vector<1x4x88xbf16>
    %264 = vector.shape_cast %263 : vector<1x4x88xbf16> to vector<4x88xbf16>
    %c116_300 = arith.constant 116 : index
    %c128_301 = arith.constant 128 : index
    %265 = vector.load %arg6[%c116_300, %c128_301] : memref<196x256xbf16, #tpu.memory_space<vmem>>, vector<4x88xbf16>
    tpu.vector_store %arg6[%c116_300, %c128_301], %264 {strides = array<i32>} : memref<196x256xbf16, #tpu.memory_space<vmem>>, vector<4x88xbf16>,
    %c0_302 = arith.constant 0 : index
    %c0_303 = arith.constant 0 : index
    %c23 = arith.constant 23 : index
    %266 = vector.load %arg5[%c0_302, %c0_303, %c23] : memref<2x16x128xbf16, #tpu.memory_space<vmem>>, vector<1x4x88xbf16>
    %267 = vector.shape_cast %266 : vector<1x4x88xbf16> to vector<4x88xbf16>
    %c120 = arith.constant 120 : index
    %c0_304 = arith.constant 0 : index
    %268 = vector.load %arg6[%c120, %c0_304] : memref<196x256xbf16, #tpu.memory_space<vmem>>, vector<4x88xbf16>
    tpu.vector_store %arg6[%c120, %c0_304], %267 {strides = array<i32>} : memref<196x256xbf16, #tpu.memory_space<vmem>>, vector<4x88xbf16>,
    %c1_305 = arith.constant 1 : index
    %c0_306 = arith.constant 0 : index
    %c23_307 = arith.constant 23 : index
    %269 = vector.load %arg5[%c1_305, %c0_306, %c23_307] : memref<2x16x128xbf16, #tpu.memory_space<vmem>>, vector<1x4x88xbf16>
    %270 = vector.shape_cast %269 : vector<1x4x88xbf16> to vector<4x88xbf16>
    %c120_308 = arith.constant 120 : index
    %c128_309 = arith.constant 128 : index
    %271 = vector.load %arg6[%c120_308, %c128_309] : memref<196x256xbf16, #tpu.memory_space<vmem>>, vector<4x88xbf16>
    tpu.vector_store %arg6[%c120_308, %c128_309], %270 {strides = array<i32>} : memref<196x256xbf16, #tpu.memory_space<vmem>>, vector<4x88xbf16>,
    %c0_310 = arith.constant 0 : index
    %c4_311 = arith.constant 4 : index
    %c23_312 = arith.constant 23 : index
    %272 = vector.load %arg5[%c0_310, %c4_311, %c23_312] : memref<2x16x128xbf16, #tpu.memory_space<vmem>>, vector<1x4x88xbf16>
    %273 = vector.shape_cast %272 : vector<1x4x88xbf16> to vector<4x88xbf16>
    %c124 = arith.constant 124 : index
    %c0_313 = arith.constant 0 : index
    %274 = vector.load %arg6[%c124, %c0_313] : memref<196x256xbf16, #tpu.memory_space<vmem>>, vector<4x88xbf16>
    tpu.vector_store %arg6[%c124, %c0_313], %273 {strides = array<i32>} : memref<196x256xbf16, #tpu.memory_space<vmem>>, vector<4x88xbf16>,
    %c1_314 = arith.constant 1 : index
    %c4_315 = arith.constant 4 : index
    %c23_316 = arith.constant 23 : index
    %275 = vector.load %arg5[%c1_314, %c4_315, %c23_316] : memref<2x16x128xbf16, #tpu.memory_space<vmem>>, vector<1x4x88xbf16>
    %276 = vector.shape_cast %275 : vector<1x4x88xbf16> to vector<4x88xbf16>
    %c124_317 = arith.constant 124 : index
    %c128_318 = arith.constant 128 : index
    %277 = vector.load %arg6[%c124_317, %c128_318] : memref<196x256xbf16, #tpu.memory_space<vmem>>, vector<4x88xbf16>
    tpu.vector_store %arg6[%c124_317, %c128_318], %276 {strides = array<i32>} : memref<196x256xbf16, #tpu.memory_space<vmem>>, vector<4x88xbf16>,
    %c0_319 = arith.constant 0 : index
    %c0_320 = arith.constant 0 : index
    %c24_321 = arith.constant 24 : index
    %278 = vector.load %arg5[%c0_319, %c0_320, %c24_321] : memref<2x16x128xbf16, #tpu.memory_space<vmem>>, vector<1x4x88xbf16>
    %279 = vector.shape_cast %278 : vector<1x4x88xbf16> to vector<4x88xbf16>
    %c128_322 = arith.constant 128 : index
    %c0_323 = arith.constant 0 : index
    %280 = vector.load %arg6[%c128_322, %c0_323] : memref<196x256xbf16, #tpu.memory_space<vmem>>, vector<4x88xbf16>
    tpu.vector_store %arg6[%c128_322, %c0_323], %279 {strides = array<i32>} : memref<196x256xbf16, #tpu.memory_space<vmem>>, vector<4x88xbf16>,
    %c1_324 = arith.constant 1 : index
    %c0_325 = arith.constant 0 : index
    %c24_326 = arith.constant 24 : index
    %281 = vector.load %arg5[%c1_324, %c0_325, %c24_326] : memref<2x16x128xbf16, #tpu.memory_space<vmem>>, vector<1x4x88xbf16>
    %282 = vector.shape_cast %281 : vector<1x4x88xbf16> to vector<4x88xbf16>
    %c128_327 = arith.constant 128 : index
    %c128_328 = arith.constant 128 : index
    %283 = vector.load %arg6[%c128_327, %c128_328] : memref<196x256xbf16, #tpu.memory_space<vmem>>, vector<4x88xbf16>
    tpu.vector_store %arg6[%c128_327, %c128_328], %282 {strides = array<i32>} : memref<196x256xbf16, #tpu.memory_space<vmem>>, vector<4x88xbf16>,
    %c0_329 = arith.constant 0 : index
    %c4_330 = arith.constant 4 : index
    %c24_331 = arith.constant 24 : index
    %284 = vector.load %arg5[%c0_329, %c4_330, %c24_331] : memref<2x16x128xbf16, #tpu.memory_space<vmem>>, vector<1x4x88xbf16>
    %285 = vector.shape_cast %284 : vector<1x4x88xbf16> to vector<4x88xbf16>
    %c132 = arith.constant 132 : index
    %c0_332 = arith.constant 0 : index
    %286 = vector.load %arg6[%c132, %c0_332] : memref<196x256xbf16, #tpu.memory_space<vmem>>, vector<4x88xbf16>
    tpu.vector_store %arg6[%c132, %c0_332], %285 {strides = array<i32>} : memref<196x256xbf16, #tpu.memory_space<vmem>>, vector<4x88xbf16>,
    %c1_333 = arith.constant 1 : index
    %c4_334 = arith.constant 4 : index
    %c24_335 = arith.constant 24 : index
    %287 = vector.load %arg5[%c1_333, %c4_334, %c24_335] : memref<2x16x128xbf16, #tpu.memory_space<vmem>>, vector<1x4x88xbf16>
    %288 = vector.shape_cast %287 : vector<1x4x88xbf16> to vector<4x88xbf16>
    %c132_336 = arith.constant 132 : index
    %c128_337 = arith.constant 128 : index
    %289 = vector.load %arg6[%c132_336, %c128_337] : memref<196x256xbf16, #tpu.memory_space<vmem>>, vector<4x88xbf16>
    tpu.vector_store %arg6[%c132_336, %c128_337], %288 {strides = array<i32>} : memref<196x256xbf16, #tpu.memory_space<vmem>>, vector<4x88xbf16>,
    %c0_338 = arith.constant 0 : index
    %c0_339 = arith.constant 0 : index
    %c25 = arith.constant 25 : index
    %290 = vector.load %arg5[%c0_338, %c0_339, %c25] : memref<2x16x128xbf16, #tpu.memory_space<vmem>>, vector<1x4x88xbf16>
    %291 = vector.shape_cast %290 : vector<1x4x88xbf16> to vector<4x88xbf16>
    %c136 = arith.constant 136 : index
    %c0_340 = arith.constant 0 : index
    %292 = vector.load %arg6[%c136, %c0_340] : memref<196x256xbf16, #tpu.memory_space<vmem>>, vector<4x88xbf16>
    tpu.vector_store %arg6[%c136, %c0_340], %291 {strides = array<i32>} : memref<196x256xbf16, #tpu.memory_space<vmem>>, vector<4x88xbf16>,
    %c1_341 = arith.constant 1 : index
    %c0_342 = arith.constant 0 : index
    %c25_343 = arith.constant 25 : index
    %293 = vector.load %arg5[%c1_341, %c0_342, %c25_343] : memref<2x16x128xbf16, #tpu.memory_space<vmem>>, vector<1x4x88xbf16>
    %294 = vector.shape_cast %293 : vector<1x4x88xbf16> to vector<4x88xbf16>
    %c136_344 = arith.constant 136 : index
    %c128_345 = arith.constant 128 : index
    %295 = vector.load %arg6[%c136_344, %c128_345] : memref<196x256xbf16, #tpu.memory_space<vmem>>, vector<4x88xbf16>
    tpu.vector_store %arg6[%c136_344, %c128_345], %294 {strides = array<i32>} : memref<196x256xbf16, #tpu.memory_space<vmem>>, vector<4x88xbf16>,
    %c0_346 = arith.constant 0 : index
    %c8_347 = arith.constant 8 : index
    %c22_348 = arith.constant 22 : index
    %296 = vector.load %arg5[%c0_346, %c8_347, %c22_348] : memref<2x16x128xbf16, #tpu.memory_space<vmem>>, vector<1x4x88xbf16>
    %297 = vector.shape_cast %296 : vector<1x4x88xbf16> to vector<4x88xbf16>
    %c140 = arith.constant 140 : index
    %c0_349 = arith.constant 0 : index
    %298 = vector.load %arg6[%c140, %c0_349] : memref<196x256xbf16, #tpu.memory_space<vmem>>, vector<4x88xbf16>
    tpu.vector_store %arg6[%c140, %c0_349], %297 {strides = array<i32>} : memref<196x256xbf16, #tpu.memory_space<vmem>>, vector<4x88xbf16>,
    %c1_350 = arith.constant 1 : index
    %c8_351 = arith.constant 8 : index
    %c22_352 = arith.constant 22 : index
    %299 = vector.load %arg5[%c1_350, %c8_351, %c22_352] : memref<2x16x128xbf16, #tpu.memory_space<vmem>>, vector<1x4x88xbf16>
    %300 = vector.shape_cast %299 : vector<1x4x88xbf16> to vector<4x88xbf16>
    %c140_353 = arith.constant 140 : index
    %c128_354 = arith.constant 128 : index
    %301 = vector.load %arg6[%c140_353, %c128_354] : memref<196x256xbf16, #tpu.memory_space<vmem>>, vector<4x88xbf16>
    tpu.vector_store %arg6[%c140_353, %c128_354], %300 {strides = array<i32>} : memref<196x256xbf16, #tpu.memory_space<vmem>>, vector<4x88xbf16>,
    %c0_355 = arith.constant 0 : index
    %c12_356 = arith.constant 12 : index
    %c22_357 = arith.constant 22 : index
    %302 = vector.load %arg5[%c0_355, %c12_356, %c22_357] : memref<2x16x128xbf16, #tpu.memory_space<vmem>>, vector<1x4x88xbf16>
    %303 = vector.shape_cast %302 : vector<1x4x88xbf16> to vector<4x88xbf16>
    %c144 = arith.constant 144 : index
    %c0_358 = arith.constant 0 : index
    %304 = vector.load %arg6[%c144, %c0_358] : memref<196x256xbf16, #tpu.memory_space<vmem>>, vector<4x88xbf16>
    tpu.vector_store %arg6[%c144, %c0_358], %303 {strides = array<i32>} : memref<196x256xbf16, #tpu.memory_space<vmem>>, vector<4x88xbf16>,
    %c1_359 = arith.constant 1 : index
    %c12_360 = arith.constant 12 : index
    %c22_361 = arith.constant 22 : index
    %305 = vector.load %arg5[%c1_359, %c12_360, %c22_361] : memref<2x16x128xbf16, #tpu.memory_space<vmem>>, vector<1x4x88xbf16>
    %306 = vector.shape_cast %305 : vector<1x4x88xbf16> to vector<4x88xbf16>
    %c144_362 = arith.constant 144 : index
    %c128_363 = arith.constant 128 : index
    %307 = vector.load %arg6[%c144_362, %c128_363] : memref<196x256xbf16, #tpu.memory_space<vmem>>, vector<4x88xbf16>
    tpu.vector_store %arg6[%c144_362, %c128_363], %306 {strides = array<i32>} : memref<196x256xbf16, #tpu.memory_space<vmem>>, vector<4x88xbf16>,
    %c0_364 = arith.constant 0 : index
    %c8_365 = arith.constant 8 : index
    %c23_366 = arith.constant 23 : index
    %308 = vector.load %arg5[%c0_364, %c8_365, %c23_366] : memref<2x16x128xbf16, #tpu.memory_space<vmem>>, vector<1x4x88xbf16>
    %309 = vector.shape_cast %308 : vector<1x4x88xbf16> to vector<4x88xbf16>
    %c148 = arith.constant 148 : index
    %c0_367 = arith.constant 0 : index
    %310 = vector.load %arg6[%c148, %c0_367] : memref<196x256xbf16, #tpu.memory_space<vmem>>, vector<4x88xbf16>
    tpu.vector_store %arg6[%c148, %c0_367], %309 {strides = array<i32>} : memref<196x256xbf16, #tpu.memory_space<vmem>>, vector<4x88xbf16>,
    %c1_368 = arith.constant 1 : index
    %c8_369 = arith.constant 8 : index
    %c23_370 = arith.constant 23 : index
    %311 = vector.load %arg5[%c1_368, %c8_369, %c23_370] : memref<2x16x128xbf16, #tpu.memory_space<vmem>>, vector<1x4x88xbf16>
    %312 = vector.shape_cast %311 : vector<1x4x88xbf16> to vector<4x88xbf16>
    %c148_371 = arith.constant 148 : index
    %c128_372 = arith.constant 128 : index
    %313 = vector.load %arg6[%c148_371, %c128_372] : memref<196x256xbf16, #tpu.memory_space<vmem>>, vector<4x88xbf16>
    tpu.vector_store %arg6[%c148_371, %c128_372], %312 {strides = array<i32>} : memref<196x256xbf16, #tpu.memory_space<vmem>>, vector<4x88xbf16>,
    %c0_373 = arith.constant 0 : index
    %c12_374 = arith.constant 12 : index
    %c23_375 = arith.constant 23 : index
    %314 = vector.load %arg5[%c0_373, %c12_374, %c23_375] : memref<2x16x128xbf16, #tpu.memory_space<vmem>>, vector<1x4x88xbf16>
    %315 = vector.shape_cast %314 : vector<1x4x88xbf16> to vector<4x88xbf16>
    %c152 = arith.constant 152 : index
    %c0_376 = arith.constant 0 : index
    %316 = vector.load %arg6[%c152, %c0_376] : memref<196x256xbf16, #tpu.memory_space<vmem>>, vector<4x88xbf16>
    tpu.vector_store %arg6[%c152, %c0_376], %315 {strides = array<i32>} : memref<196x256xbf16, #tpu.memory_space<vmem>>, vector<4x88xbf16>,
    %c1_377 = arith.constant 1 : index
    %c12_378 = arith.constant 12 : index
    %c23_379 = arith.constant 23 : index
    %317 = vector.load %arg5[%c1_377, %c12_378, %c23_379] : memref<2x16x128xbf16, #tpu.memory_space<vmem>>, vector<1x4x88xbf16>
    %318 = vector.shape_cast %317 : vector<1x4x88xbf16> to vector<4x88xbf16>
    %c152_380 = arith.constant 152 : index
    %c128_381 = arith.constant 128 : index
    %319 = vector.load %arg6[%c152_380, %c128_381] : memref<196x256xbf16, #tpu.memory_space<vmem>>, vector<4x88xbf16>
    tpu.vector_store %arg6[%c152_380, %c128_381], %318 {strides = array<i32>} : memref<196x256xbf16, #tpu.memory_space<vmem>>, vector<4x88xbf16>,
    %c0_382 = arith.constant 0 : index
    %c8_383 = arith.constant 8 : index
    %c24_384 = arith.constant 24 : index
    %320 = vector.load %arg5[%c0_382, %c8_383, %c24_384] : memref<2x16x128xbf16, #tpu.memory_space<vmem>>, vector<1x4x88xbf16>
    %321 = vector.shape_cast %320 : vector<1x4x88xbf16> to vector<4x88xbf16>
    %c156 = arith.constant 156 : index
    %c0_385 = arith.constant 0 : index
    %322 = vector.load %arg6[%c156, %c0_385] : memref<196x256xbf16, #tpu.memory_space<vmem>>, vector<4x88xbf16>
    tpu.vector_store %arg6[%c156, %c0_385], %321 {strides = array<i32>} : memref<196x256xbf16, #tpu.memory_space<vmem>>, vector<4x88xbf16>,
    %c1_386 = arith.constant 1 : index
    %c8_387 = arith.constant 8 : index
    %c24_388 = arith.constant 24 : index
    %323 = vector.load %arg5[%c1_386, %c8_387, %c24_388] : memref<2x16x128xbf16, #tpu.memory_space<vmem>>, vector<1x4x88xbf16>
    %324 = vector.shape_cast %323 : vector<1x4x88xbf16> to vector<4x88xbf16>
    %c156_389 = arith.constant 156 : index
    %c128_390 = arith.constant 128 : index
    %325 = vector.load %arg6[%c156_389, %c128_390] : memref<196x256xbf16, #tpu.memory_space<vmem>>, vector<4x88xbf16>
    tpu.vector_store %arg6[%c156_389, %c128_390], %324 {strides = array<i32>} : memref<196x256xbf16, #tpu.memory_space<vmem>>, vector<4x88xbf16>,
    %c0_391 = arith.constant 0 : index
    %c12_392 = arith.constant 12 : index
    %c24_393 = arith.constant 24 : index
    %326 = vector.load %arg5[%c0_391, %c12_392, %c24_393] : memref<2x16x128xbf16, #tpu.memory_space<vmem>>, vector<1x4x88xbf16>
    %327 = vector.shape_cast %326 : vector<1x4x88xbf16> to vector<4x88xbf16>
    %c160 = arith.constant 160 : index
    %c0_394 = arith.constant 0 : index
    %328 = vector.load %arg6[%c160, %c0_394] : memref<196x256xbf16, #tpu.memory_space<vmem>>, vector<4x88xbf16>
    tpu.vector_store %arg6[%c160, %c0_394], %327 {strides = array<i32>} : memref<196x256xbf16, #tpu.memory_space<vmem>>, vector<4x88xbf16>,
    %c1_395 = arith.constant 1 : index
    %c12_396 = arith.constant 12 : index
    %c24_397 = arith.constant 24 : index
    %329 = vector.load %arg5[%c1_395, %c12_396, %c24_397] : memref<2x16x128xbf16, #tpu.memory_space<vmem>>, vector<1x4x88xbf16>
    %330 = vector.shape_cast %329 : vector<1x4x88xbf16> to vector<4x88xbf16>
    %c160_398 = arith.constant 160 : index
    %c128_399 = arith.constant 128 : index
    %331 = vector.load %arg6[%c160_398, %c128_399] : memref<196x256xbf16, #tpu.memory_space<vmem>>, vector<4x88xbf16>
    tpu.vector_store %arg6[%c160_398, %c128_399], %330 {strides = array<i32>} : memref<196x256xbf16, #tpu.memory_space<vmem>>, vector<4x88xbf16>,
    %c0_400 = arith.constant 0 : index
    %c8_401 = arith.constant 8 : index
    %c25_402 = arith.constant 25 : index
    %332 = vector.load %arg5[%c0_400, %c8_401, %c25_402] : memref<2x16x128xbf16, #tpu.memory_space<vmem>>, vector<1x4x88xbf16>
    %333 = vector.shape_cast %332 : vector<1x4x88xbf16> to vector<4x88xbf16>
    %c164 = arith.constant 164 : index
    %c0_403 = arith.constant 0 : index
    %334 = vector.load %arg6[%c164, %c0_403] : memref<196x256xbf16, #tpu.memory_space<vmem>>, vector<4x88xbf16>
    tpu.vector_store %arg6[%c164, %c0_403], %333 {strides = array<i32>} : memref<196x256xbf16, #tpu.memory_space<vmem>>, vector<4x88xbf16>,
    %c1_404 = arith.constant 1 : index
    %c8_405 = arith.constant 8 : index
    %c25_406 = arith.constant 25 : index
    %335 = vector.load %arg5[%c1_404, %c8_405, %c25_406] : memref<2x16x128xbf16, #tpu.memory_space<vmem>>, vector<1x4x88xbf16>
    %336 = vector.shape_cast %335 : vector<1x4x88xbf16> to vector<4x88xbf16>
    %c164_407 = arith.constant 164 : index
    %c128_408 = arith.constant 128 : index
    %337 = vector.load %arg6[%c164_407, %c128_408] : memref<196x256xbf16, #tpu.memory_space<vmem>>, vector<4x88xbf16>
    tpu.vector_store %arg6[%c164_407, %c128_408], %336 {strides = array<i32>} : memref<196x256xbf16, #tpu.memory_space<vmem>>, vector<4x88xbf16>,
    %c0_409 = arith.constant 0 : index
    %c0_410 = arith.constant 0 : index
    %c33 = arith.constant 33 : index
    %338 = vector.load %arg5[%c0_409, %c0_410, %c33] : memref<2x16x128xbf16, #tpu.memory_space<vmem>>, vector<1x4x88xbf16>
    %339 = vector.shape_cast %338 : vector<1x4x88xbf16> to vector<4x88xbf16>
    %c168 = arith.constant 168 : index
    %c0_411 = arith.constant 0 : index
    %340 = vector.load %arg6[%c168, %c0_411] : memref<196x256xbf16, #tpu.memory_space<vmem>>, vector<4x88xbf16>
    tpu.vector_store %arg6[%c168, %c0_411], %339 {strides = array<i32>} : memref<196x256xbf16, #tpu.memory_space<vmem>>, vector<4x88xbf16>,
    %c1_412 = arith.constant 1 : index
    %c0_413 = arith.constant 0 : index
    %c33_414 = arith.constant 33 : index
    %341 = vector.load %arg5[%c1_412, %c0_413, %c33_414] : memref<2x16x128xbf16, #tpu.memory_space<vmem>>, vector<1x4x88xbf16>
    %342 = vector.shape_cast %341 : vector<1x4x88xbf16> to vector<4x88xbf16>
    %c168_415 = arith.constant 168 : index
    %c128_416 = arith.constant 128 : index
    %343 = vector.load %arg6[%c168_415, %c128_416] : memref<196x256xbf16, #tpu.memory_space<vmem>>, vector<4x88xbf16>
    tpu.vector_store %arg6[%c168_415, %c128_416], %342 {strides = array<i32>} : memref<196x256xbf16, #tpu.memory_space<vmem>>, vector<4x88xbf16>,
    %c0_417 = arith.constant 0 : index
    %c4_418 = arith.constant 4 : index
    %c33_419 = arith.constant 33 : index
    %344 = vector.load %arg5[%c0_417, %c4_418, %c33_419] : memref<2x16x128xbf16, #tpu.memory_space<vmem>>, vector<1x4x88xbf16>
    %345 = vector.shape_cast %344 : vector<1x4x88xbf16> to vector<4x88xbf16>
    %c172 = arith.constant 172 : index
    %c0_420 = arith.constant 0 : index
    %346 = vector.load %arg6[%c172, %c0_420] : memref<196x256xbf16, #tpu.memory_space<vmem>>, vector<4x88xbf16>
    tpu.vector_store %arg6[%c172, %c0_420], %345 {strides = array<i32>} : memref<196x256xbf16, #tpu.memory_space<vmem>>, vector<4x88xbf16>,
    %c1_421 = arith.constant 1 : index
    %c4_422 = arith.constant 4 : index
    %c33_423 = arith.constant 33 : index
    %347 = vector.load %arg5[%c1_421, %c4_422, %c33_423] : memref<2x16x128xbf16, #tpu.memory_space<vmem>>, vector<1x4x88xbf16>
    %348 = vector.shape_cast %347 : vector<1x4x88xbf16> to vector<4x88xbf16>
    %c172_424 = arith.constant 172 : index
    %c128_425 = arith.constant 128 : index
    %349 = vector.load %arg6[%c172_424, %c128_425] : memref<196x256xbf16, #tpu.memory_space<vmem>>, vector<4x88xbf16>
    tpu.vector_store %arg6[%c172_424, %c128_425], %348 {strides = array<i32>} : memref<196x256xbf16, #tpu.memory_space<vmem>>, vector<4x88xbf16>,
    %c0_426 = arith.constant 0 : index
    %c0_427 = arith.constant 0 : index
    %c34 = arith.constant 34 : index
    %350 = vector.load %arg5[%c0_426, %c0_427, %c34] : memref<2x16x128xbf16, #tpu.memory_space<vmem>>, vector<1x4x88xbf16>
    %351 = vector.shape_cast %350 : vector<1x4x88xbf16> to vector<4x88xbf16>
    %c176 = arith.constant 176 : index
    %c0_428 = arith.constant 0 : index
    %352 = vector.load %arg6[%c176, %c0_428] : memref<196x256xbf16, #tpu.memory_space<vmem>>, vector<4x88xbf16>
    tpu.vector_store %arg6[%c176, %c0_428], %351 {strides = array<i32>} : memref<196x256xbf16, #tpu.memory_space<vmem>>, vector<4x88xbf16>,
    %c1_429 = arith.constant 1 : index
    %c0_430 = arith.constant 0 : index
    %c34_431 = arith.constant 34 : index
    %353 = vector.load %arg5[%c1_429, %c0_430, %c34_431] : memref<2x16x128xbf16, #tpu.memory_space<vmem>>, vector<1x4x88xbf16>
    %354 = vector.shape_cast %353 : vector<1x4x88xbf16> to vector<4x88xbf16>
    %c176_432 = arith.constant 176 : index
    %c128_433 = arith.constant 128 : index
    %355 = vector.load %arg6[%c176_432, %c128_433] : memref<196x256xbf16, #tpu.memory_space<vmem>>, vector<4x88xbf16>
    tpu.vector_store %arg6[%c176_432, %c128_433], %354 {strides = array<i32>} : memref<196x256xbf16, #tpu.memory_space<vmem>>, vector<4x88xbf16>,
    %c0_434 = arith.constant 0 : index
    %c4_435 = arith.constant 4 : index
    %c34_436 = arith.constant 34 : index
    %356 = vector.load %arg5[%c0_434, %c4_435, %c34_436] : memref<2x16x128xbf16, #tpu.memory_space<vmem>>, vector<1x4x88xbf16>
    %357 = vector.shape_cast %356 : vector<1x4x88xbf16> to vector<4x88xbf16>
    %c180 = arith.constant 180 : index
    %c0_437 = arith.constant 0 : index
    %358 = vector.load %arg6[%c180, %c0_437] : memref<196x256xbf16, #tpu.memory_space<vmem>>, vector<4x88xbf16>
    tpu.vector_store %arg6[%c180, %c0_437], %357 {strides = array<i32>} : memref<196x256xbf16, #tpu.memory_space<vmem>>, vector<4x88xbf16>,
    %c1_438 = arith.constant 1 : index
    %c4_439 = arith.constant 4 : index
    %c34_440 = arith.constant 34 : index
    %359 = vector.load %arg5[%c1_438, %c4_439, %c34_440] : memref<2x16x128xbf16, #tpu.memory_space<vmem>>, vector<1x4x88xbf16>
    %360 = vector.shape_cast %359 : vector<1x4x88xbf16> to vector<4x88xbf16>
    %c180_441 = arith.constant 180 : index
    %c128_442 = arith.constant 128 : index
    %361 = vector.load %arg6[%c180_441, %c128_442] : memref<196x256xbf16, #tpu.memory_space<vmem>>, vector<4x88xbf16>
    tpu.vector_store %arg6[%c180_441, %c128_442], %360 {strides = array<i32>} : memref<196x256xbf16, #tpu.memory_space<vmem>>, vector<4x88xbf16>,
    %c0_443 = arith.constant 0 : index
    %c0_444 = arith.constant 0 : index
    %c35 = arith.constant 35 : index
    %362 = vector.load %arg5[%c0_443, %c0_444, %c35] : memref<2x16x128xbf16, #tpu.memory_space<vmem>>, vector<1x4x88xbf16>
    %363 = vector.shape_cast %362 : vector<1x4x88xbf16> to vector<4x88xbf16>
    %c184 = arith.constant 184 : index
    %c0_445 = arith.constant 0 : index
    %364 = vector.load %arg6[%c184, %c0_445] : memref<196x256xbf16, #tpu.memory_space<vmem>>, vector<4x88xbf16>
    tpu.vector_store %arg6[%c184, %c0_445], %363 {strides = array<i32>} : memref<196x256xbf16, #tpu.memory_space<vmem>>, vector<4x88xbf16>,
    %c1_446 = arith.constant 1 : index
    %c0_447 = arith.constant 0 : index
    %c35_448 = arith.constant 35 : index
    %365 = vector.load %arg5[%c1_446, %c0_447, %c35_448] : memref<2x16x128xbf16, #tpu.memory_space<vmem>>, vector<1x4x88xbf16>
    %366 = vector.shape_cast %365 : vector<1x4x88xbf16> to vector<4x88xbf16>
    %c184_449 = arith.constant 184 : index
    %c128_450 = arith.constant 128 : index
    %367 = vector.load %arg6[%c184_449, %c128_450] : memref<196x256xbf16, #tpu.memory_space<vmem>>, vector<4x88xbf16>
    tpu.vector_store %arg6[%c184_449, %c128_450], %366 {strides = array<i32>} : memref<196x256xbf16, #tpu.memory_space<vmem>>, vector<4x88xbf16>,
    %c0_451 = arith.constant 0 : index
    %c4_452 = arith.constant 4 : index
    %c35_453 = arith.constant 35 : index
    %368 = vector.load %arg5[%c0_451, %c4_452, %c35_453] : memref<2x16x128xbf16, #tpu.memory_space<vmem>>, vector<1x4x88xbf16>
    %369 = vector.shape_cast %368 : vector<1x4x88xbf16> to vector<4x88xbf16>
    %c188 = arith.constant 188 : index
    %c0_454 = arith.constant 0 : index
    %370 = vector.load %arg6[%c188, %c0_454] : memref<196x256xbf16, #tpu.memory_space<vmem>>, vector<4x88xbf16>
    tpu.vector_store %arg6[%c188, %c0_454], %369 {strides = array<i32>} : memref<196x256xbf16, #tpu.memory_space<vmem>>, vector<4x88xbf16>,
    %c1_455 = arith.constant 1 : index
    %c4_456 = arith.constant 4 : index
    %c35_457 = arith.constant 35 : index
    %371 = vector.load %arg5[%c1_455, %c4_456, %c35_457] : memref<2x16x128xbf16, #tpu.memory_space<vmem>>, vector<1x4x88xbf16>
    %372 = vector.shape_cast %371 : vector<1x4x88xbf16> to vector<4x88xbf16>
    %c188_458 = arith.constant 188 : index
    %c128_459 = arith.constant 128 : index
    %373 = vector.load %arg6[%c188_458, %c128_459] : memref<196x256xbf16, #tpu.memory_space<vmem>>, vector<4x88xbf16>
    tpu.vector_store %arg6[%c188_458, %c128_459], %372 {strides = array<i32>} : memref<196x256xbf16, #tpu.memory_space<vmem>>, vector<4x88xbf16>,
    %c0_460 = arith.constant 0 : index
    %c0_461 = arith.constant 0 : index
    %c36_462 = arith.constant 36 : index
    %374 = vector.load %arg5[%c0_460, %c0_461, %c36_462] : memref<2x16x128xbf16, #tpu.memory_space<vmem>>, vector<1x4x88xbf16>
    %375 = vector.shape_cast %374 : vector<1x4x88xbf16> to vector<4x88xbf16>
    %c192 = arith.constant 192 : index
    %c0_463 = arith.constant 0 : index
    %376 = vector.load %arg6[%c192, %c0_463] : memref<196x256xbf16, #tpu.memory_space<vmem>>, vector<4x88xbf16>
    tpu.vector_store %arg6[%c192, %c0_463], %375 {strides = array<i32>} : memref<196x256xbf16, #tpu.memory_space<vmem>>, vector<4x88xbf16>,
    %c1_464 = arith.constant 1 : index
    %c0_465 = arith.constant 0 : index
    %c36_466 = arith.constant 36 : index
    %377 = vector.load %arg5[%c1_464, %c0_465, %c36_466] : memref<2x16x128xbf16, #tpu.memory_space<vmem>>, vector<1x4x88xbf16>
    %378 = vector.shape_cast %377 : vector<1x4x88xbf16> to vector<4x88xbf16>
    %c192_467 = arith.constant 192 : index
    %c128_468 = arith.constant 128 : index
    %379 = vector.load %arg6[%c192_467, %c128_468] : memref<196x256xbf16, #tpu.memory_space<vmem>>, vector<4x88xbf16>
    tpu.vector_store %arg6[%c192_467, %c128_468], %378 {strides = array<i32>} : memref<196x256xbf16, #tpu.memory_space<vmem>>, vector<4x88xbf16>,
    %c0_469 = arith.constant 0 : index
    %c0_470 = arith.constant 0 : index
    %380 = vector.load %arg2[%c0_469, %c0_470] : memref<8x196xbf16, #tpu.memory_space<vmem>>, vector<8x196xbf16>
    %c0_471 = arith.constant 0 : index
    %c0_472 = arith.constant 0 : index
    %381 = vector.load %arg6[%c0_471, %c0_472] : memref<196x256xbf16, #tpu.memory_space<vmem>>, vector<196x256xbf16>
    %cst_473 = arith.constant dense<0.000000e+00> : vector<8x256xf32>
    %382 = tpu.matmul %380, %381, %cst_473 {dimension_numbers = #tpu.dot_dimension_numbers<[1], [0], [0], [1], [0, 0, 1, 1], [], []>} : vector<8x196xbf16>, vector<196x256xbf16>, vector<8x256xf32> -> vector<8x256xf32>
    %383 = vector.extract_strided_slice %382 {offsets = [0, 0], sizes = [8, 128], strides = [1, 1]} : vector<8x256xf32> to vector<8x128xf32>
    %c0_474 = arith.constant 0 : index
    %c0_475 = arith.constant 0 : index
    %c0_476 = arith.constant 0 : index
    %384 = vector.load %arg4[%c0_474, %c0_475, %c0_476] : memref<2x8x128xf32, #tpu.memory_space<vmem>>, vector<1x8x128xf32>
    %385 = vector.shape_cast %384 : vector<1x8x128xf32> to vector<8x128xf32>
    %386 = vector.shape_cast %383 : vector<8x128xf32> to vector<1x8x128xf32>
    tpu.vector_store %arg4[%c0_474, %c0_475, %c0_476], %386 {strides = array<i32>} : memref<2x8x128xf32, #tpu.memory_space<vmem>>, vector<1x8x128xf32>,
    %387 = vector.extract_strided_slice %382 {offsets = [0, 128], sizes = [8, 128], strides = [1, 1]} : vector<8x256xf32> to vector<8x128xf32>
    %c1_477 = arith.constant 1 : index
    %c0_478 = arith.constant 0 : index
    %c0_479 = arith.constant 0 : index
    %388 = vector.load %arg4[%c1_477, %c0_478, %c0_479] : memref<2x8x128xf32, #tpu.memory_space<vmem>>, vector<1x8x128xf32>
    %389 = vector.shape_cast %388 : vector<1x8x128xf32> to vector<8x128xf32>
    %390 = vector.shape_cast %387 : vector<8x128xf32> to vector<1x8x128xf32>
    tpu.vector_store %arg4[%c1_477, %c0_478, %c0_479], %390 {strides = array<i32>} : memref<2x8x128xf32, #tpu.memory_space<vmem>>, vector<1x8x128xf32>,
    return
  }
  func.func @transform_0(%arg0: i32) -> (i32, i32, i32) {
    %c0_i32 = arith.constant 0 : i32
    %c0_i32_0 = arith.constant 0 : i32
    %c0_i32_1 = arith.constant 0 : i32
    return %arg0, %c0_i32, %c0_i32_0 : i32, i32, i32
  }
  func.func @transform_1(%arg0: i32) -> (i32, i32) {
    %c0_i32 = arith.constant 0 : i32
    %c0_i32_0 = arith.constant 0 : i32
    %c0_i32_1 = arith.constant 0 : i32
    return %c0_i32, %c0_i32_0 : i32, i32
  }
  func.func @transform_2(%arg0: i32) -> (i32, i32, i32) {
    %c0_i32 = arith.constant 0 : i32
    %c0_i32_0 = arith.constant 0 : i32
    %c0_i32_1 = arith.constant 0 : i32
    %c0_i32_2 = arith.constant 0 : i32
    return %c0_i32, %c0_i32_0, %c0_i32_1 : i32, i32, i32
  }
  func.func @transform_3(%arg0: i32) -> (i32, i32, i32) {
    %c0_i32 = arith.constant 0 : i32
    %c0_i32_0 = arith.constant 0 : i32
    %c0_i32_1 = arith.constant 0 : i32
    return %arg0, %c0_i32, %c0_i32_0 : i32, i32, i32
  }
}

</mosaic_0001>

<llo_original>
// kernel: tpu_custom_call.1
$region0: #{tpu_custom_call.1}
  #allocation0 [shape = 'u32[]', space=smem, size = 0x4, offset = 0x4, fixed_abs, tag = 'smem constant byte address 0x4 - core index']
  #allocation1 [shape = 'u32[144,128]{1,0:T(1,128)}', space=vmem, size = 0x12000, scoped, tag = 'internal scratch']
  #allocation2 [shape = 'bf16[2,16,128]{2,1,0:T(16,128)(2,1)}', space=vmem, size = 0x2000, scoped, tag = 'scratch operand']
  #allocation3 [shape = 'bf16[196,256]{1,0:T(8,128)(2,1)}', space=vmem, size = 0x19000, scoped, tag = 'scratch operand']
  %s0 = inlined_call_operand.hbm [shape: f32[2,16,128], index: 0, kind: input, shape index: {}]
  %s1 = inlined_call_operand.hbm [shape: bf16[8,196], index: 1, kind: input, shape index: {}]
  %s2 = inlined_call_operand.vmem [shape: f32[1,4,128], index: 2, kind: input, shape index: {}]
  %s3 = inlined_call_operand.hbm [shape: f32[2,8,128], index: 3, kind: output, shape index: {}]
  %s4 = sld [smem:[#allocation0]]
  $region30: #{tpu_custom_call.1} parent=0
    _
  %s6 = ssub.s32 1, %s4
  %s7 = scalar_select 0, %s6, %s4
  $region1: #{tpu_custom_call.1} parent=0
    #allocation4 [shape = 'u8[16384]{0}', space=vmem, size = 0x4000, scoped, tag = 'input window, operand 0, single buffered']
    #allocation5 [shape = 's32[1]{0}', space=sflag, size = 0x4, scoped, tag = 'scoped memory for tpu_custom_call.1']
    #allocation6 [shape = 's32[1]{0}', space=sflag, size = 0x4, scoped, tag = 'scoped memory for tpu_custom_call.1']
    #allocation7 [shape = 'u8[4096]{0}', space=vmem, size = 0x1000, scoped, tag = 'input window, operand 1, single buffered']
    #allocation8 [shape = 's32[1]{0}', space=sflag, size = 0x4, scoped, tag = 'scoped memory for tpu_custom_call.1']
    #allocation9 [shape = 'u8[8192]{0}', space=vmem, size = 0x2000, scoped, tag = 'output window, operand 0, single buffered']
    %8 = vsyncpa [#allocation5], 0
    %9 = vsyncpa [#allocation8], 0
    %10 = vsyncpa [#allocation6], 0
    // Predicated region
    $region2: #{tpu_custom_call.1} parent=1 // pred_check
      _
    $region3: #{tpu_custom_call.1} parent=1 // pred_check_branch
      %12 = sbr.rel (0) target = $region5
    $region4: #{tpu_custom_call.1} parent=1 // pred_region
      %s14 = ssub.s32 512, 512
      %15 = vsyncadd [#allocation5], %s14
      %s16 = sshll.u32 [#allocation4], 4
      %s17 = int_to_ptr.vmem [resolvable:$true] %s16
      %22 = dma.hbm_to_vmem [thread:$0]  %s0, 512, %s17, [#allocation5], 128, 128, 8
    $region5: #{tpu_custom_call.1} parent=1 // pred_fallthru
      _
    // Predicated region
    $region6: #{tpu_custom_call.1} parent=1 // pred_check
      _
    $region7: #{tpu_custom_call.1} parent=1 // pred_check_branch
      %24 = sbr.rel (0) target = $region9
    $region8: #{tpu_custom_call.1} parent=1 // pred_region
      %s26 = ssub.s32 128, 128
      %27 = vsyncadd [#allocation8], %s26
      %s29 = sshll.u32 [#allocation7], 4
      %s30 = int_to_ptr.vmem [resolvable:$true] %s29
      %32 = dma.hbm_to_vmem [thread:$0]  %s1, 128, %s30, [#allocation8]
    $region9: #{tpu_custom_call.1} parent=1 // pred_fallthru
      _
    // Predicated region
    $region10: #{tpu_custom_call.1} parent=1 // pred_check
      _
    $region11: #{tpu_custom_call.1} parent=1 // pred_check_branch
      %34 = sbr.rel (0) target = $region13
    $region12: #{tpu_custom_call.1} parent=1 // pred_region
      _
    $region13: #{tpu_custom_call.1} parent=1 // pred_fallthru
      _
    // Predicated region
    $region14: #{tpu_custom_call.1} parent=1 // pred_check
      _
    $region15: #{tpu_custom_call.1} parent=1 // pred_check_branch
      %36 = sbr.rel (0) target = $region17
    $region16: #{tpu_custom_call.1} parent=1 // pred_region
      %37 = dma.done [#allocation5], 512
    $region17: #{tpu_custom_call.1} parent=1 // pred_fallthru
      _
    // Predicated region
    $region18: #{tpu_custom_call.1} parent=1 // pred_check
      _
    $region19: #{tpu_custom_call.1} parent=1 // pred_check_branch
      %39 = sbr.rel (0) target = $region21
    $region20: #{tpu_custom_call.1} parent=1 // pred_region
      %40 = dma.done [#allocation8], 128
    $region21: #{tpu_custom_call.1} parent=1 // pred_fallthru
      _
    %v42 = vld [vmem:[#allocation4] sm:$0xff]
    %v43 = vld [vmem:[#allocation4 + $0x8] sm:$0xff]
    %v44 = vld [vmem:[#allocation4 + $0x10] sm:$0xff]
    %v45 = vld [vmem:[#allocation4 + $0x18] sm:$0xff]
    %vm46 = vcmask 1043456
    %v47 = vsel %vm46, %v42, 0.0
    %48 = vadd.xlane.f32.xlu0 %v47
    %v49 = vpop.xlane.xlu0 %48
    %v50 = vsel %vm46, %v44, 0.0
    %51 = vadd.xlane.f32.xlu0 %v50
    %v52 = vpop.xlane.xlu0 %51
    %v53 = vadd.f32 %v49, 0.0
    %v54 = vadd.f32 %v52, 0.0
    %v55 = vmul.f32 %v42, %v42
    %v56 = vmul.f32 %v44, %v44
    %v57 = vsel %vm46, %v55, 0.0
    %58 = vadd.xlane.f32.xlu0 %v57
    %v59 = vpop.xlane.xlu0 %58
    %v60 = vsel %vm46, %v56, 0.0
    %61 = vadd.xlane.f32.xlu0 %v60
    %v62 = vpop.xlane.xlu0 %61
    %v63 = vadd.f32 %v59, 0.0
    %v64 = vadd.f32 %v62, 0.0
    %vm65 = vcmask 1047556
    %v66 = vsel %vm65, %v42, 0.0
    %67 = vadd.xlane.f32.xlu0 %v66
    %v68 = vpop.xlane.xlu0 %67
    %v69 = vsel %vm65, %v44, 0.0
    %70 = vadd.xlane.f32.xlu0 %v69
    %v71 = vpop.xlane.xlu0 %70
    %v74 = vrot.slane %v68, 4
    %v75 = vrot.slane %v71, 4
    %v78 = vadd.f32 %v53, %v74
    %v79 = vadd.f32 %v54, %v75
    %v80 = vsel %vm65, %v55, 0.0
    %81 = vadd.xlane.f32.xlu0 %v80
    %v82 = vpop.xlane.xlu0 %81
    %v83 = vsel %vm65, %v56, 0.0
    %84 = vadd.xlane.f32.xlu0 %v83
    %v85 = vpop.xlane.xlu0 %84
    %v88 = vrot.slane %v82, 4
    %v89 = vrot.slane %v85, 4
    %v92 = vadd.f32 %v63, %v88
    %v93 = vadd.f32 %v64, %v89
    %v94 = vsel %vm46, %v43, 0.0
    %95 = vadd.xlane.f32.xlu0 %v94
    %v96 = vpop.xlane.xlu0 %95
    %v97 = vsel %vm46, %v45, 0.0
    %98 = vadd.xlane.f32.xlu0 %v97
    %v99 = vpop.xlane.xlu0 %98
    %v100 = vadd.f32 %v78, %v96
    %v101 = vadd.f32 %v79, %v99
    %v102 = vmul.f32 %v43, %v43
    %v103 = vmul.f32 %v45, %v45
    %v104 = vsel %vm46, %v102, 0.0
    %105 = vadd.xlane.f32.xlu0 %v104
    %v106 = vpop.xlane.xlu0 %105
    %v107 = vsel %vm46, %v103, 0.0
    %108 = vadd.xlane.f32.xlu0 %v107
    %v109 = vpop.xlane.xlu0 %108
    %v110 = vadd.f32 %v92, %v106
    %v111 = vadd.f32 %v93, %v109
    %v112 = vsel %vm65, %v43, 0.0
    %113 = vadd.xlane.f32.xlu0 %v112
    %v114 = vpop.xlane.xlu0 %113
    %v115 = vsel %vm65, %v45, 0.0
    %116 = vadd.xlane.f32.xlu0 %v115
    %v117 = vpop.xlane.xlu0 %116
    %v120 = vrot.slane %v114, 4
    %v121 = vrot.slane %v117, 4
    %v124 = vadd.f32 %v100, %v120
    %v125 = vadd.f32 %v101, %v121
    %v126 = vsel %vm65, %v102, 0.0
    %127 = vadd.xlane.f32.xlu0 %v126
    %v128 = vpop.xlane.xlu0 %127
    %v129 = vsel %vm65, %v103, 0.0
    %130 = vadd.xlane.f32.xlu0 %v129
    %v131 = vpop.xlane.xlu0 %130
    %v134 = vrot.slane %v128, 4
    %v135 = vrot.slane %v131, 4
    %v138 = vadd.f32 %v110, %v134
    %v139 = vadd.f32 %v111, %v135
    %v140 = vmul.f32 %v124, 0.00390625
    %v141 = vmul.f32 %v125, 0.00390625
    %v142 = vmul.f32 %v138, 0.00390625
    %v143 = vmul.f32 %v139, 0.00390625
    %v144 = vmul.f32 %v140, %v140
    %v145 = vmul.f32 %v141, %v141
    %v146 = vsub.f32 %v142, %v144
    %v147 = vsub.f32 %v143, %v145
    %v148 = vmax.f32 %v146, 0.0
    %v149 = vmax.f32 %v147, 0.0
    %v150 = vadd.f32 %v148, 1e-05
    %v151 = vadd.f32 %v149, 1e-05
    %v152 = vrsqrt.pop %v150
    %v153 = vrsqrt.pop %v151
    %v154 = vld [vmem:[%s2] sm:$0x1]
    %156 = vset.pattern.permute.xlu0 0
    %157 = vperm.xlu0 %156, %v140
    %v158 = vpop.permute.xlu0 %157
    %161 = vset.pattern.permute.xlu0 0
    %162 = vperm.xlu0 %161, %v141
    %v163 = vpop.permute.xlu0 %162
    %v165 = vsub.f32 %v42, %v158
    %v166 = vsub.f32 %v44, %v163
    %168 = vset.pattern.permute.xlu0 0
    %169 = vperm.xlu0 %168, %v152
    %v170 = vpop.permute.xlu0 %169
    %173 = vset.pattern.permute.xlu0 0
    %174 = vperm.xlu0 %173, %v153
    %v175 = vpop.permute.xlu0 %174
    %v177 = vmul.f32 %v165, %v170
    %v178 = vmul.f32 %v166, %v175
    %v179 = vlaneseq
    %v180 = vshrl.u32 %v179, 7
    %v181 = vsub.s32 0, %v180
    %v182 = vrot.slane %v154, %v181
    %v183 = vmul.f32 %v177, %v182
    %v184 = vmul.f32 %v178, %v182
    %v185 = vpack.c.bf16 %v183, %v183
    %v186 = vpack.c.bf16 %v184, %v184
    %187 = vst [vmem:[#allocation2] sm:$0x3] %v185
    %188 = vst [vmem:[#allocation2 + $0x8] sm:$0x3] %v186
    %v189 = vld [vmem:[%s2 + $0x1] sm:$0x1]
    %v190 = vrot.slane %v158, 4
    %v191 = vrot.slane %v163, 4
    %v194 = vsub.f32 %v42, %v190
    %v195 = vsub.f32 %v44, %v191
    %v196 = vrot.slane %v170, 4
    %v197 = vrot.slane %v175, 4
    %v200 = vmul.f32 %v194, %v196
    %v201 = vmul.f32 %v195, %v197
    %v202 = vlaneseq
    %v203 = vshrl.u32 %v202, 7
    %v204 = vsub.s32 0, %v203
    %v205 = vrot.slane %v189, %v204
    %v206 = vmul.f32 %v200, %v205
    %v207 = vmul.f32 %v201, %v205
    %v208 = vpack.c.bf16 %v206, %v206
    %v209 = vpack.c.bf16 %v207, %v207
    %210 = vst [vmem:[#allocation2] sm:$0xc] %v208
    %211 = vst [vmem:[#allocation2 + $0x8] sm:$0xc] %v209
    %v212 = vld [vmem:[%s2 + $0x2] sm:$0x1]
    %v213 = vsub.f32 %v43, %v158
    %v214 = vsub.f32 %v45, %v163
    %v215 = vmul.f32 %v213, %v170
    %v216 = vmul.f32 %v214, %v175
    %v217 = vlaneseq
    %v218 = vshrl.u32 %v217, 7
    %v219 = vsub.s32 0, %v218
    %v220 = vrot.slane %v212, %v219
    %v221 = vmul.f32 %v215, %v220
    %v222 = vmul.f32 %v216, %v220
    %v223 = vpack.c.bf16 %v221, %v221
    %v224 = vpack.c.bf16 %v222, %v222
    %v227 = vrot.slane %v223, 4
    %v228 = vrot.slane %v224, 4
    %231 = vst [vmem:[#allocation2] sm:$0x30] %v227
    %232 = vst [vmem:[#allocation2 + $0x8] sm:$0x30] %v228
    %v233 = vld [vmem:[%s2 + $0x3] sm:$0x1]
    %v234 = vsub.f32 %v43, %v190
    %v235 = vsub.f32 %v45, %v191
    %v236 = vmul.f32 %v234, %v196
    %v237 = vmul.f32 %v235, %v197
    %v238 = vlaneseq
    %v239 = vshrl.u32 %v238, 7
    %v240 = vsub.s32 0, %v239
    %v241 = vrot.slane %v233, %v240
    %v242 = vmul.f32 %v236, %v241
    %v243 = vmul.f32 %v237, %v241
    %v244 = vpack.c.bf16 %v242, %v242
    %v245 = vpack.c.bf16 %v243, %v243
    %v248 = vrot.slane %v244, 4
    %v249 = vrot.slane %v245, 4
    %252 = vst [vmem:[#allocation2] sm:$0xc0] %v248
    %253 = vst [vmem:[#allocation2 + $0x8] sm:$0xc0] %v249
    %v254 = vld [vmem:[#allocation2] sm:$0x3]
    %vm255 = vcmask 713728
    %256 = vst.msk [vmem:[#allocation3] sm:$0x3] %vm255, %v254
    %s257 = scalar_lea.vmem [#allocation2], 8
    %v258 = vld [vmem:[%s257] sm:$0x3]
    %259 = vst.msk [vmem:[#allocation3 + $0x4] sm:$0x3] %vm255, %v258
    %v260 = vld [vmem:[#allocation2] sm:$0xc]
    %vm261 = vcmask 715778
    %262 = vst.msk [vmem:[#allocation3] sm:$0xc] %vm261, %v260
    %v263 = vld [vmem:[%s257] sm:$0xc]
    %264 = vst.msk [vmem:[#allocation3 + $0x4] sm:$0xc] %vm261, %v263
    %v265 = vld [vmem:[#allocation2] sm:$0x3]
    %v267 = vunpack.c.l.b16 %v265
    %v268 = vpack.c.b16 %v267, %v267
    %269 = vrot.lane.b32.xlu0 %v268, 127
    %v270 = vpop.permute.xlu0 %269
    %272 = vst.msk [vmem:[#allocation3 + $0x8] sm:$0x3] %vm255, %v270
    %v273 = vld [vmem:[%s257] sm:$0x3]
    %v275 = vunpack.c.l.b16 %v273
    %v276 = vpack.c.b16 %v275, %v275
    %277 = vrot.lane.b32.xlu0 %v276, 127
    %v278 = vpop.permute.xlu0 %277
    %280 = vst.msk [vmem:[#allocation3 + $0xc] sm:$0x3] %vm255, %v278
    %v281 = vld [vmem:[#allocation2] sm:$0xc]
    %v283 = vunpack.c.l.b16 %v281
    %v284 = vpack.c.b16 %v283, %v283
    %285 = vrot.lane.b32.xlu0 %v284, 127
    %v286 = vpop.permute.xlu0 %285
    %288 = vst.msk [vmem:[#allocation3 + $0x8] sm:$0xc] %vm261, %v286
    %v289 = vld [vmem:[%s257] sm:$0xc]
    %v291 = vunpack.c.l.b16 %v289
    %v292 = vpack.c.b16 %v291, %v291
    %293 = vrot.lane.b32.xlu0 %v292, 127
    %v294 = vpop.permute.xlu0 %293
    %296 = vst.msk [vmem:[#allocation3 + $0xc] sm:$0xc] %vm261, %v294
    %v297 = vld [vmem:[#allocation2] sm:$0x3]
    %v299 = vunpack.c.l.b16 %v297
    %v300 = vpack.c.b16 %v299, %v299
    %301 = vrot.lane.b32.xlu0 %v300, 126
    %v302 = vpop.permute.xlu0 %301
    %304 = vst.msk [vmem:[#allocation3 + $0x10] sm:$0x3] %vm255, %v302
    %v305 = vld [vmem:[%s257] sm:$0x3]
    %v307 = vunpack.c.l.b16 %v305
    %v308 = vpack.c.b16 %v307, %v307
    %309 = vrot.lane.b32.xlu0 %v308, 126
    %v310 = vpop.permute.xlu0 %309
    %312 = vst.msk [vmem:[#allocation3 + $0x14] sm:$0x3] %vm255, %v310
    %v313 = vld [vmem:[#allocation2] sm:$0xc]
    %v315 = vunpack.c.l.b16 %v313
    %v316 = vpack.c.b16 %v315, %v315
    %317 = vrot.lane.b32.xlu0 %v316, 126
    %v318 = vpop.permute.xlu0 %317
    %320 = vst.msk [vmem:[#allocation3 + $0x10] sm:$0xc] %vm261, %v318
    %v321 = vld [vmem:[%s257] sm:$0xc]
    %v323 = vunpack.c.l.b16 %v321
    %v324 = vpack.c.b16 %v323, %v323
    %325 = vrot.lane.b32.xlu0 %v324, 126
    %v326 = vpop.permute.xlu0 %325
    %328 = vst.msk [vmem:[#allocation3 + $0x14] sm:$0xc] %vm261, %v326
    %v329 = vld [vmem:[#allocation2] sm:$0x3]
    %v331 = vunpack.c.l.b16 %v329
    %v332 = vpack.c.b16 %v331, %v331
    %333 = vrot.lane.b32.xlu0 %v332, 125
    %v334 = vpop.permute.xlu0 %333
    %336 = vst.msk [vmem:[#allocation3 + $0x18] sm:$0x3] %vm255, %v334
    %v337 = vld [vmem:[%s257] sm:$0x3]
    %v339 = vunpack.c.l.b16 %v337
    %v340 = vpack.c.b16 %v339, %v339
    %341 = vrot.lane.b32.xlu0 %v340, 125
    %v342 = vpop.permute.xlu0 %341
    %344 = vst.msk [vmem:[#allocation3 + $0x1c] sm:$0x3] %vm255, %v342
    %v345 = vld [vmem:[#allocation2] sm:$0x30]
    %v347 = vunpack.c.h.b16 %v345
    %v348 = vpack.c.b16 %v347, %v347
    %v349 = vrot.slane %v348, 6
    %351 = vst.msk [vmem:[#allocation3 + $0x18] sm:$0xc] %vm261, %v349
    %v352 = vld [vmem:[%s257] sm:$0x30]
    %v354 = vunpack.c.h.b16 %v352
    %v355 = vpack.c.b16 %v354, %v354
    %v356 = vrot.slane %v355, 6
    %358 = vst.msk [vmem:[#allocation3 + $0x1c] sm:$0xc] %vm261, %v356
    %v359 = vld [vmem:[#allocation2] sm:$0xc0]
    %v361 = vunpack.c.h.b16 %v359
    %v362 = vpack.c.b16 %v361, %v361
    %v363 = vrot.slane %v362, 6
    %v364 = vrot.slane %v363, 4
    %366 = vst.msk [vmem:[#allocation3 + $0x20] sm:$0x3] %vm255, %v364
    %v367 = vld [vmem:[%s257] sm:$0xc0]
    %v369 = vunpack.c.h.b16 %v367
    %v370 = vpack.c.b16 %v369, %v369
    %v371 = vrot.slane %v370, 6
    %v372 = vrot.slane %v371, 4
    %374 = vst.msk [vmem:[#allocation3 + $0x24] sm:$0x3] %vm255, %v372
    %v375 = vld [vmem:[#allocation2] sm:$0x30]
    %v377 = vunpack.c.h.b16 %v375
    %v378 = vpack.c.b16 %v377, %v377
    %v379 = vrot.slane %v378, 6
    %380 = vrot.lane.b32.xlu0 %v379, 127
    %v381 = vpop.permute.xlu0 %380
    %383 = vst.msk [vmem:[#allocation3 + $0x20] sm:$0xc] %vm261, %v381
    %v384 = vld [vmem:[%s257] sm:$0x30]
    %v386 = vunpack.c.h.b16 %v384
    %v387 = vpack.c.b16 %v386, %v386
    %v388 = vrot.slane %v387, 6
    %389 = vrot.lane.b32.xlu0 %v388, 127
    %v390 = vpop.permute.xlu0 %389
    %392 = vst.msk [vmem:[#allocation3 + $0x24] sm:$0xc] %vm261, %v390
    %v393 = vld [vmem:[#allocation2] sm:$0xc0]
    %v395 = vunpack.c.h.b16 %v393
    %v396 = vpack.c.b16 %v395, %v395
    %v397 = vrot.slane %v396, 6
    %v398 = vrot.slane %v397, 4
    %399 = vrot.lane.b32.xlu0 %v398, 127
    %v400 = vpop.permute.xlu0 %399
    %402 = vst.msk [vmem:[#allocation3 + $0x28] sm:$0x3] %vm255, %v400
    %v403 = vld [vmem:[%s257] sm:$0xc0]
    %v405 = vunpack.c.h.b16 %v403
    %v406 = vpack.c.b16 %v405, %v405
    %v407 = vrot.slane %v406, 6
    %v408 = vrot.slane %v407, 4
    %409 = vrot.lane.b32.xlu0 %v408, 127
    %v410 = vpop.permute.xlu0 %409
    %412 = vst.msk [vmem:[#allocation3 + $0x2c] sm:$0x3] %vm255, %v410
    %v413 = vld [vmem:[#allocation2] sm:$0x30]
    %v415 = vunpack.c.h.b16 %v413
    %v416 = vpack.c.b16 %v415, %v415
    %v417 = vrot.slane %v416, 6
    %418 = vrot.lane.b32.xlu0 %v417, 126
    %v419 = vpop.permute.xlu0 %418
    %421 = vst.msk [vmem:[#allocation3 + $0x28] sm:$0xc] %vm261, %v419
    %v422 = vld [vmem:[%s257] sm:$0x30]
    %v424 = vunpack.c.h.b16 %v422
    %v425 = vpack.c.b16 %v424, %v424
    %v426 = vrot.slane %v425, 6
    %427 = vrot.lane.b32.xlu0 %v426, 126
    %v428 = vpop.permute.xlu0 %427
    %430 = vst.msk [vmem:[#allocation3 + $0x2c] sm:$0xc] %vm261, %v428
    %v431 = vld [vmem:[#allocation2] sm:$0xc0]
    %v433 = vunpack.c.h.b16 %v431
    %v434 = vpack.c.b16 %v433, %v433
    %v435 = vrot.slane %v434, 6
    %v436 = vrot.slane %v435, 4
    %437 = vrot.lane.b32.xlu0 %v436, 126
    %v438 = vpop.permute.xlu0 %437
    %440 = vst.msk [vmem:[#allocation3 + $0x30] sm:$0x3] %vm255, %v438
    %v441 = vld [vmem:[%s257] sm:$0xc0]
    %v443 = vunpack.c.h.b16 %v441
    %v444 = vpack.c.b16 %v443, %v443
    %v445 = vrot.slane %v444, 6
    %v446 = vrot.slane %v445, 4
    %447 = vrot.lane.b32.xlu0 %v446, 126
    %v448 = vpop.permute.xlu0 %447
    %450 = vst.msk [vmem:[#allocation3 + $0x34] sm:$0x3] %vm255, %v448
    %v451 = vld [vmem:[#allocation2] sm:$0x30]
    %v453 = vunpack.c.h.b16 %v451
    %v454 = vpack.c.b16 %v453, %v453
    %v455 = vrot.slane %v454, 6
    %456 = vrot.lane.b32.xlu0 %v455, 125
    %v457 = vpop.permute.xlu0 %456
    %459 = vst.msk [vmem:[#allocation3 + $0x30] sm:$0xc] %vm261, %v457
    %v460 = vld [vmem:[%s257] sm:$0x30]
    %v462 = vunpack.c.h.b16 %v460
    %v463 = vpack.c.b16 %v462, %v462
    %v464 = vrot.slane %v463, 6
    %465 = vrot.lane.b32.xlu0 %v464, 125
    %v466 = vpop.permute.xlu0 %465
    %468 = vst.msk [vmem:[#allocation3 + $0x34] sm:$0xc] %vm261, %v466
    %v469 = vld [vmem:[#allocation2] sm:$0x3]
    %v471 = vunpack.c.l.b16 %v469
    %v472 = vpack.c.b16 %v471, %v471
    %473 = vrot.lane.b32.xlu0 %v472, 117
    %v474 = vpop.permute.xlu0 %473
    %476 = vst.msk [vmem:[#allocation3 + $0x38] sm:$0x3] %vm255, %v474
    %v477 = vld [vmem:[%s257] sm:$0x3]
    %v479 = vunpack.c.l.b16 %v477
    %v480 = vpack.c.b16 %v479, %v479
    %481 = vrot.lane.b32.xlu0 %v480, 117
    %v482 = vpop.permute.xlu0 %481
    %484 = vst.msk [vmem:[#allocation3 + $0x3c] sm:$0x3] %vm255, %v482
    %v485 = vld [vmem:[#allocation2] sm:$0xc]
    %v487 = vunpack.c.l.b16 %v485
    %v488 = vpack.c.b16 %v487, %v487
    %489 = vrot.lane.b32.xlu0 %v488, 117
    %v490 = vpop.permute.xlu0 %489
    %492 = vst.msk [vmem:[#allocation3 + $0x38] sm:$0xc] %vm261, %v490
    %v493 = vld [vmem:[%s257] sm:$0xc]
    %v495 = vunpack.c.l.b16 %v493
    %v496 = vpack.c.b16 %v495, %v495
    %497 = vrot.lane.b32.xlu0 %v496, 117
    %v498 = vpop.permute.xlu0 %497
    %500 = vst.msk [vmem:[#allocation3 + $0x3c] sm:$0xc] %vm261, %v498
    %v501 = vld [vmem:[#allocation2] sm:$0x3]
    %v503 = vunpack.c.l.b16 %v501
    %v504 = vpack.c.b16 %v503, %v503
    %505 = vrot.lane.b32.xlu0 %v504, 116
    %v506 = vpop.permute.xlu0 %505
    %508 = vst.msk [vmem:[#allocation3 + $0x40] sm:$0x3] %vm255, %v506
    %v509 = vld [vmem:[%s257] sm:$0x3]
    %v511 = vunpack.c.l.b16 %v509
    %v512 = vpack.c.b16 %v511, %v511
    %513 = vrot.lane.b32.xlu0 %v512, 116
    %v514 = vpop.permute.xlu0 %513
    %516 = vst.msk [vmem:[#allocation3 + $0x44] sm:$0x3] %vm255, %v514
    %v517 = vld [vmem:[#allocation2] sm:$0xc]
    %v519 = vunpack.c.l.b16 %v517
    %v520 = vpack.c.b16 %v519, %v519
    %521 = vrot.lane.b32.xlu0 %v520, 116
    %v522 = vpop.permute.xlu0 %521
    %524 = vst.msk [vmem:[#allocation3 + $0x40] sm:$0xc] %vm261, %v522
    %v525 = vld [vmem:[%s257] sm:$0xc]
    %v527 = vunpack.c.l.b16 %v525
    %v528 = vpack.c.b16 %v527, %v527
    %529 = vrot.lane.b32.xlu0 %v528, 116
    %v530 = vpop.permute.xlu0 %529
    %532 = vst.msk [vmem:[#allocation3 + $0x44] sm:$0xc] %vm261, %v530
    %v533 = vld [vmem:[#allocation2] sm:$0x3]
    %v535 = vunpack.c.l.b16 %v533
    %v536 = vpack.c.b16 %v535, %v535
    %537 = vrot.lane.b32.xlu0 %v536, 115
    %v538 = vpop.permute.xlu0 %537
    %540 = vst.msk [vmem:[#allocation3 + $0x48] sm:$0x3] %vm255, %v538
    %v541 = vld [vmem:[%s257] sm:$0x3]
    %v543 = vunpack.c.l.b16 %v541
    %v544 = vpack.c.b16 %v543, %v543
    %545 = vrot.lane.b32.xlu0 %v544, 115
    %v546 = vpop.permute.xlu0 %545
    %548 = vst.msk [vmem:[#allocation3 + $0x4c] sm:$0x3] %vm255, %v546
    %v549 = vld [vmem:[#allocation2] sm:$0xc]
    %v551 = vunpack.c.l.b16 %v549
    %v552 = vpack.c.b16 %v551, %v551
    %553 = vrot.lane.b32.xlu0 %v552, 115
    %v554 = vpop.permute.xlu0 %553
    %556 = vst.msk [vmem:[#allocation3 + $0x48] sm:$0xc] %vm261, %v554
    %v557 = vld [vmem:[%s257] sm:$0xc]
    %v559 = vunpack.c.l.b16 %v557
    %v560 = vpack.c.b16 %v559, %v559
    %561 = vrot.lane.b32.xlu0 %v560, 115
    %v562 = vpop.permute.xlu0 %561
    %564 = vst.msk [vmem:[#allocation3 + $0x4c] sm:$0xc] %vm261, %v562
    %v565 = vld [vmem:[#allocation2] sm:$0x3]
    %v567 = vunpack.c.l.b16 %v565
    %v568 = vpack.c.b16 %v567, %v567
    %569 = vrot.lane.b32.xlu0 %v568, 114
    %v570 = vpop.permute.xlu0 %569
    %572 = vst.msk [vmem:[#allocation3 + $0x50] sm:$0x3] %vm255, %v570
    %v573 = vld [vmem:[%s257] sm:$0x3]
    %v575 = vunpack.c.l.b16 %v573
    %v576 = vpack.c.b16 %v575, %v575
    %577 = vrot.lane.b32.xlu0 %v576, 114
    %v578 = vpop.permute.xlu0 %577
    %580 = vst.msk [vmem:[#allocation3 + $0x54] sm:$0x3] %vm255, %v578
    %v581 = vld [vmem:[#allocation2] sm:$0x30]
    %v583 = vunpack.c.h.b16 %v581
    %v584 = vpack.c.b16 %v583, %v583
    %v585 = vrot.slane %v584, 6
    %586 = vrot.lane.b32.xlu0 %v585, 117
    %v587 = vpop.permute.xlu0 %586
    %589 = vst.msk [vmem:[#allocation3 + $0x50] sm:$0xc] %vm261, %v587
    %v590 = vld [vmem:[%s257] sm:$0x30]
    %v592 = vunpack.c.h.b16 %v590
    %v593 = vpack.c.b16 %v592, %v592
    %v594 = vrot.slane %v593, 6
    %595 = vrot.lane.b32.xlu0 %v594, 117
    %v596 = vpop.permute.xlu0 %595
    %598 = vst.msk [vmem:[#allocation3 + $0x54] sm:$0xc] %vm261, %v596
    %v599 = vld [vmem:[#allocation2] sm:$0xc0]
    %v601 = vunpack.c.h.b16 %v599
    %v602 = vpack.c.b16 %v601, %v601
    %v603 = vrot.slane %v602, 6
    %v604 = vrot.slane %v603, 4
    %605 = vrot.lane.b32.xlu0 %v604, 117
    %v606 = vpop.permute.xlu0 %605
    %608 = vst.msk [vmem:[#allocation3 + $0x58] sm:$0x3] %vm255, %v606
    %v609 = vld [vmem:[%s257] sm:$0xc0]
    %v611 = vunpack.c.h.b16 %v609
    %v612 = vpack.c.b16 %v611, %v611
    %v613 = vrot.slane %v612, 6
    %v614 = vrot.slane %v613, 4
    %615 = vrot.lane.b32.xlu0 %v614, 117
    %v616 = vpop.permute.xlu0 %615
    %618 = vst.msk [vmem:[#allocation3 + $0x5c] sm:$0x3] %vm255, %v616
    %v619 = vld [vmem:[#allocation2] sm:$0x30]
    %v621 = vunpack.c.h.b16 %v619
    %v622 = vpack.c.b16 %v621, %v621
    %v623 = vrot.slane %v622, 6
    %624 = vrot.lane.b32.xlu0 %v623, 116
    %v625 = vpop.permute.xlu0 %624
    %627 = vst.msk [vmem:[#allocation3 + $0x58] sm:$0xc] %vm261, %v625
    %v628 = vld [vmem:[%s257] sm:$0x30]
    %v630 = vunpack.c.h.b16 %v628
    %v631 = vpack.c.b16 %v630, %v630
    %v632 = vrot.slane %v631, 6
    %633 = vrot.lane.b32.xlu0 %v632, 116
    %v634 = vpop.permute.xlu0 %633
    %636 = vst.msk [vmem:[#allocation3 + $0x5c] sm:$0xc] %vm261, %v634
    %v637 = vld [vmem:[#allocation2] sm:$0xc0]
    %v639 = vunpack.c.h.b16 %v637
    %v640 = vpack.c.b16 %v639, %v639
    %v641 = vrot.slane %v640, 6
    %v642 = vrot.slane %v641, 4
    %643 = vrot.lane.b32.xlu0 %v642, 116
    %v644 = vpop.permute.xlu0 %643
    %646 = vst.msk [vmem:[#allocation3 + $0x60] sm:$0x3] %vm255, %v644
    %v647 = vld [vmem:[%s257] sm:$0xc0]
    %v649 = vunpack.c.h.b16 %v647
    %v650 = vpack.c.b16 %v649, %v649
    %v651 = vrot.slane %v650, 6
    %v652 = vrot.slane %v651, 4
    %653 = vrot.lane.b32.xlu0 %v652, 116
    %v654 = vpop.permute.xlu0 %653
    %656 = vst.msk [vmem:[#allocation3 + $0x64] sm:$0x3] %vm255, %v654
    %v657 = vld [vmem:[#allocation2] sm:$0x30]
    %v659 = vunpack.c.h.b16 %v657
    %v660 = vpack.c.b16 %v659, %v659
    %v661 = vrot.slane %v660, 6
    %662 = vrot.lane.b32.xlu0 %v661, 115
    %v663 = vpop.permute.xlu0 %662
    %665 = vst.msk [vmem:[#allocation3 + $0x60] sm:$0xc] %vm261, %v663
    %v666 = vld [vmem:[%s257] sm:$0x30]
    %v668 = vunpack.c.h.b16 %v666
    %v669 = vpack.c.b16 %v668, %v668
    %v670 = vrot.slane %v669, 6
    %671 = vrot.lane.b32.xlu0 %v670, 115
    %v672 = vpop.permute.xlu0 %671
    %674 = vst.msk [vmem:[#allocation3 + $0x64] sm:$0xc] %vm261, %v672
    %v675 = vld [vmem:[#allocation2] sm:$0xc0]
    %v677 = vunpack.c.h.b16 %v675
    %v678 = vpack.c.b16 %v677, %v677
    %v679 = vrot.slane %v678, 6
    %v680 = vrot.slane %v679, 4
    %681 = vrot.lane.b32.xlu0 %v680, 115
    %v682 = vpop.permute.xlu0 %681
    %684 = vst.msk [vmem:[#allocation3 + $0x68] sm:$0x3] %vm255, %v682
    %v685 = vld [vmem:[%s257] sm:$0xc0]
    %v687 = vunpack.c.h.b16 %v685
    %v688 = vpack.c.b16 %v687, %v687
    %v689 = vrot.slane %v688, 6
    %v690 = vrot.slane %v689, 4
    %691 = vrot.lane.b32.xlu0 %v690, 115
    %v692 = vpop.permute.xlu0 %691
    %694 = vst.msk [vmem:[#allocation3 + $0x6c] sm:$0x3] %vm255, %v692
    %v695 = vld [vmem:[#allocation2] sm:$0x30]
    %v697 = vunpack.c.h.b16 %v695
    %v698 = vpack.c.b16 %v697, %v697
    %v699 = vrot.slane %v698, 6
    %700 = vrot.lane.b32.xlu0 %v699, 114
    %v701 = vpop.permute.xlu0 %700
    %703 = vst.msk [vmem:[#allocation3 + $0x68] sm:$0xc] %vm261, %v701
    %v704 = vld [vmem:[%s257] sm:$0x30]
    %v706 = vunpack.c.h.b16 %v704
    %v707 = vpack.c.b16 %v706, %v706
    %v708 = vrot.slane %v707, 6
    %709 = vrot.lane.b32.xlu0 %v708, 114
    %v710 = vpop.permute.xlu0 %709
    %712 = vst.msk [vmem:[#allocation3 + $0x6c] sm:$0xc] %vm261, %v710
    %v713 = vld [vmem:[#allocation2] sm:$0x3]
    %v715 = vunpack.c.l.b16 %v713
    %v716 = vpack.c.b16 %v715, %v715
    %717 = vrot.lane.b32.xlu0 %v716, 106
    %v718 = vpop.permute.xlu0 %717
    %720 = vst.msk [vmem:[#allocation3 + $0x70] sm:$0x3] %vm255, %v718
    %v721 = vld [vmem:[%s257] sm:$0x3]
    %v723 = vunpack.c.l.b16 %v721
    %v724 = vpack.c.b16 %v723, %v723
    %725 = vrot.lane.b32.xlu0 %v724, 106
    %v726 = vpop.permute.xlu0 %725
    %728 = vst.msk [vmem:[#allocation3 + $0x74] sm:$0x3] %vm255, %v726
    %v729 = vld [vmem:[#allocation2] sm:$0xc]
    %v731 = vunpack.c.l.b16 %v729
    %v732 = vpack.c.b16 %v731, %v731
    %733 = vrot.lane.b32.xlu0 %v732, 106
    %v734 = vpop.permute.xlu0 %733
    %736 = vst.msk [vmem:[#allocation3 + $0x70] sm:$0xc] %vm261, %v734
    %v737 = vld [vmem:[%s257] sm:$0xc]
    %v739 = vunpack.c.l.b16 %v737
    %v740 = vpack.c.b16 %v739, %v739
    %741 = vrot.lane.b32.xlu0 %v740, 106
    %v742 = vpop.permute.xlu0 %741
    %744 = vst.msk [vmem:[#allocation3 + $0x74] sm:$0xc] %vm261, %v742
    %v745 = vld [vmem:[#allocation2] sm:$0x3]
    %v747 = vunpack.c.l.b16 %v745
    %v748 = vpack.c.b16 %v747, %v747
    %749 = vrot.lane.b32.xlu0 %v748, 105
    %v750 = vpop.permute.xlu0 %749
    %752 = vst.msk [vmem:[#allocation3 + $0x78] sm:$0x3] %vm255, %v750
    %v753 = vld [vmem:[%s257] sm:$0x3]
    %v755 = vunpack.c.l.b16 %v753
    %v756 = vpack.c.b16 %v755, %v755
    %757 = vrot.lane.b32.xlu0 %v756, 105
    %v758 = vpop.permute.xlu0 %757
    %760 = vst.msk [vmem:[#allocation3 + $0x7c] sm:$0x3] %vm255, %v758
    %v761 = vld [vmem:[#allocation2] sm:$0xc]
    %v763 = vunpack.c.l.b16 %v761
    %v764 = vpack.c.b16 %v763, %v763
    %765 = vrot.lane.b32.xlu0 %v764, 105
    %v766 = vpop.permute.xlu0 %765
    %768 = vst.msk [vmem:[#allocation3 + $0x78] sm:$0xc] %vm261, %v766
    %v769 = vld [vmem:[%s257] sm:$0xc]
    %v771 = vunpack.c.l.b16 %v769
    %v772 = vpack.c.b16 %v771, %v771
    %773 = vrot.lane.b32.xlu0 %v772, 105
    %v774 = vpop.permute.xlu0 %773
    %776 = vst.msk [vmem:[#allocation3 + $0x7c] sm:$0xc] %vm261, %v774
    %v777 = vld [vmem:[#allocation2] sm:$0x3]
    %v779 = vunpack.c.l.b16 %v777
    %v780 = vpack.c.b16 %v779, %v779
    %781 = vrot.lane.b32.xlu0 %v780, 104
    %v782 = vpop.permute.xlu0 %781
    %784 = vst.msk [vmem:[#allocation3 + $0x80] sm:$0x3] %vm255, %v782
    %v785 = vld [vmem:[%s257] sm:$0x3]
    %v787 = vunpack.c.l.b16 %v785
    %v788 = vpack.c.b16 %v787, %v787
    %789 = vrot.lane.b32.xlu0 %v788, 104
    %v790 = vpop.permute.xlu0 %789
    %792 = vst.msk [vmem:[#allocation3 + $0x84] sm:$0x3] %vm255, %v790
    %v793 = vld [vmem:[#allocation2] sm:$0xc]
    %v795 = vunpack.c.l.b16 %v793
    %v796 = vpack.c.b16 %v795, %v795
    %797 = vrot.lane.b32.xlu0 %v796, 104
    %v798 = vpop.permute.xlu0 %797
    %800 = vst.msk [vmem:[#allocation3 + $0x80] sm:$0xc] %vm261, %v798
    %v801 = vld [vmem:[%s257] sm:$0xc]
    %v803 = vunpack.c.l.b16 %v801
    %v804 = vpack.c.b16 %v803, %v803
    %805 = vrot.lane.b32.xlu0 %v804, 104
    %v806 = vpop.permute.xlu0 %805
    %808 = vst.msk [vmem:[#allocation3 + $0x84] sm:$0xc] %vm261, %v806
    %v809 = vld [vmem:[#allocation2] sm:$0x3]
    %v811 = vunpack.c.l.b16 %v809
    %v812 = vpack.c.b16 %v811, %v811
    %813 = vrot.lane.b32.xlu0 %v812, 103
    %v814 = vpop.permute.xlu0 %813
    %816 = vst.msk [vmem:[#allocation3 + $0x88] sm:$0x3] %vm255, %v814
    %v817 = vld [vmem:[%s257] sm:$0x3]
    %v819 = vunpack.c.l.b16 %v817
    %v820 = vpack.c.b16 %v819, %v819
    %821 = vrot.lane.b32.xlu0 %v820, 103
    %v822 = vpop.permute.xlu0 %821
    %824 = vst.msk [vmem:[#allocation3 + $0x8c] sm:$0x3] %vm255, %v822
    %v825 = vld [vmem:[#allocation2] sm:$0x30]
    %v827 = vunpack.c.h.b16 %v825
    %v828 = vpack.c.b16 %v827, %v827
    %v829 = vrot.slane %v828, 6
    %830 = vrot.lane.b32.xlu0 %v829, 106
    %v831 = vpop.permute.xlu0 %830
    %833 = vst.msk [vmem:[#allocation3 + $0x88] sm:$0xc] %vm261, %v831
    %v834 = vld [vmem:[%s257] sm:$0x30]
    %v836 = vunpack.c.h.b16 %v834
    %v837 = vpack.c.b16 %v836, %v836
    %v838 = vrot.slane %v837, 6
    %839 = vrot.lane.b32.xlu0 %v838, 106
    %v840 = vpop.permute.xlu0 %839
    %842 = vst.msk [vmem:[#allocation3 + $0x8c] sm:$0xc] %vm261, %v840
    %v843 = vld [vmem:[#allocation2] sm:$0xc0]
    %v845 = vunpack.c.h.b16 %v843
    %v846 = vpack.c.b16 %v845, %v845
    %v847 = vrot.slane %v846, 6
    %v848 = vrot.slane %v847, 4
    %849 = vrot.lane.b32.xlu0 %v848, 106
    %v850 = vpop.permute.xlu0 %849
    %852 = vst.msk [vmem:[#allocation3 + $0x90] sm:$0x3] %vm255, %v850
    %v853 = vld [vmem:[%s257] sm:$0xc0]
    %v855 = vunpack.c.h.b16 %v853
    %v856 = vpack.c.b16 %v855, %v855
    %v857 = vrot.slane %v856, 6
    %v858 = vrot.slane %v857, 4
    %859 = vrot.lane.b32.xlu0 %v858, 106
    %v860 = vpop.permute.xlu0 %859
    %862 = vst.msk [vmem:[#allocation3 + $0x94] sm:$0x3] %vm255, %v860
    %v863 = vld [vmem:[#allocation2] sm:$0x30]
    %v865 = vunpack.c.h.b16 %v863
    %v866 = vpack.c.b16 %v865, %v865
    %v867 = vrot.slane %v866, 6
    %868 = vrot.lane.b32.xlu0 %v867, 105
    %v869 = vpop.permute.xlu0 %868
    %871 = vst.msk [vmem:[#allocation3 + $0x90] sm:$0xc] %vm261, %v869
    %v872 = vld [vmem:[%s257] sm:$0x30]
    %v874 = vunpack.c.h.b16 %v872
    %v875 = vpack.c.b16 %v874, %v874
    %v876 = vrot.slane %v875, 6
    %877 = vrot.lane.b32.xlu0 %v876, 105
    %v878 = vpop.permute.xlu0 %877
    %880 = vst.msk [vmem:[#allocation3 + $0x94] sm:$0xc] %vm261, %v878
    %v881 = vld [vmem:[#allocation2] sm:$0xc0]
    %v883 = vunpack.c.h.b16 %v881
    %v884 = vpack.c.b16 %v883, %v883
    %v885 = vrot.slane %v884, 6
    %v886 = vrot.slane %v885, 4
    %887 = vrot.lane.b32.xlu0 %v886, 105
    %v888 = vpop.permute.xlu0 %887
    %890 = vst.msk [vmem:[#allocation3 + $0x98] sm:$0x3] %vm255, %v888
    %v891 = vld [vmem:[%s257] sm:$0xc0]
    %v893 = vunpack.c.h.b16 %v891
    %v894 = vpack.c.b16 %v893, %v893
    %v895 = vrot.slane %v894, 6
    %v896 = vrot.slane %v895, 4
    %897 = vrot.lane.b32.xlu0 %v896, 105
    %v898 = vpop.permute.xlu0 %897
    %900 = vst.msk [vmem:[#allocation3 + $0x9c] sm:$0x3] %vm255, %v898
    %v901 = vld [vmem:[#allocation2] sm:$0x30]
    %v903 = vunpack.c.h.b16 %v901
    %v904 = vpack.c.b16 %v903, %v903
    %v905 = vrot.slane %v904, 6
    %906 = vrot.lane.b32.xlu0 %v905, 104
    %v907 = vpop.permute.xlu0 %906
    %909 = vst.msk [vmem:[#allocation3 + $0x98] sm:$0xc] %vm261, %v907
    %v910 = vld [vmem:[%s257] sm:$0x30]
    %v912 = vunpack.c.h.b16 %v910
    %v913 = vpack.c.b16 %v912, %v912
    %v914 = vrot.slane %v913, 6
    %915 = vrot.lane.b32.xlu0 %v914, 104
    %v916 = vpop.permute.xlu0 %915
    %918 = vst.msk [vmem:[#allocation3 + $0x9c] sm:$0xc] %vm261, %v916
    %v919 = vld [vmem:[#allocation2] sm:$0xc0]
    %v921 = vunpack.c.h.b16 %v919
    %v922 = vpack.c.b16 %v921, %v921
    %v923 = vrot.slane %v922, 6
    %v924 = vrot.slane %v923, 4
    %925 = vrot.lane.b32.xlu0 %v924, 104
    %v926 = vpop.permute.xlu0 %925
    %928 = vst.msk [vmem:[#allocation3 + $0xa0] sm:$0x3] %vm255, %v926
    %v929 = vld [vmem:[%s257] sm:$0xc0]
    %v931 = vunpack.c.h.b16 %v929
    %v932 = vpack.c.b16 %v931, %v931
    %v933 = vrot.slane %v932, 6
    %v934 = vrot.slane %v933, 4
    %935 = vrot.lane.b32.xlu0 %v934, 104
    %v936 = vpop.permute.xlu0 %935
    %938 = vst.msk [vmem:[#allocation3 + $0xa4] sm:$0x3] %vm255, %v936
    %v939 = vld [vmem:[#allocation2] sm:$0x30]
    %v941 = vunpack.c.h.b16 %v939
    %v942 = vpack.c.b16 %v941, %v941
    %v943 = vrot.slane %v942, 6
    %944 = vrot.lane.b32.xlu0 %v943, 103
    %v945 = vpop.permute.xlu0 %944
    %947 = vst.msk [vmem:[#allocation3 + $0xa0] sm:$0xc] %vm261, %v945
    %v948 = vld [vmem:[%s257] sm:$0x30]
    %v950 = vunpack.c.h.b16 %v948
    %v951 = vpack.c.b16 %v950, %v950
    %v952 = vrot.slane %v951, 6
    %953 = vrot.lane.b32.xlu0 %v952, 103
    %v954 = vpop.permute.xlu0 %953
    %956 = vst.msk [vmem:[#allocation3 + $0xa4] sm:$0xc] %vm261, %v954
    %v957 = vld [vmem:[#allocation2] sm:$0x3]
    %v959 = vunpack.c.l.b16 %v957
    %v960 = vpack.c.b16 %v959, %v959
    %961 = vrot.lane.b32.xlu0 %v960, 95
    %v962 = vpop.permute.xlu0 %961
    %964 = vst.msk [vmem:[#allocation3 + $0xa8] sm:$0x3] %vm255, %v962
    %v965 = vld [vmem:[%s257] sm:$0x3]
    %v967 = vunpack.c.l.b16 %v965
    %v968 = vpack.c.b16 %v967, %v967
    %969 = vrot.lane.b32.xlu0 %v968, 95
    %v970 = vpop.permute.xlu0 %969
    %972 = vst.msk [vmem:[#allocation3 + $0xac] sm:$0x3] %vm255, %v970
    %v973 = vld [vmem:[#allocation2] sm:$0xc]
    %v975 = vunpack.c.l.b16 %v973
    %v976 = vpack.c.b16 %v975, %v975
    %977 = vrot.lane.b32.xlu0 %v976, 95
    %v978 = vpop.permute.xlu0 %977
    %980 = vst.msk [vmem:[#allocation3 + $0xa8] sm:$0xc] %vm261, %v978
    %v981 = vld [vmem:[%s257] sm:$0xc]
    %v983 = vunpack.c.l.b16 %v981
    %v984 = vpack.c.b16 %v983, %v983
    %985 = vrot.lane.b32.xlu0 %v984, 95
    %v986 = vpop.permute.xlu0 %985
    %988 = vst.msk [vmem:[#allocation3 + $0xac] sm:$0xc] %vm261, %v986
    %v989 = vld [vmem:[#allocation2] sm:$0x3]
    %v991 = vunpack.c.l.b16 %v989
    %v992 = vpack.c.b16 %v991, %v991
    %993 = vrot.lane.b32.xlu0 %v992, 94
    %v994 = vpop.permute.xlu0 %993
    %996 = vst.msk [vmem:[#allocation3 + $0xb0] sm:$0x3] %vm255, %v994
    %v997 = vld [vmem:[%s257] sm:$0x3]
    %v999 = vunpack.c.l.b16 %v997
    %v1000 = vpack.c.b16 %v999, %v999
    %1001 = vrot.lane.b32.xlu0 %v1000, 94
    %v1002 = vpop.permute.xlu0 %1001
    %1004 = vst.msk [vmem:[#allocation3 + $0xb4] sm:$0x3] %vm255, %v1002
    %v1005 = vld [vmem:[#allocation2] sm:$0xc]
    %v1007 = vunpack.c.l.b16 %v1005
    %v1008 = vpack.c.b16 %v1007, %v1007
    %1009 = vrot.lane.b32.xlu0 %v1008, 94
    %v1010 = vpop.permute.xlu0 %1009
    %1012 = vst.msk [vmem:[#allocation3 + $0xb0] sm:$0xc] %vm261, %v1010
    %v1013 = vld [vmem:[%s257] sm:$0xc]
    %v1015 = vunpack.c.l.b16 %v1013
    %v1016 = vpack.c.b16 %v1015, %v1015
    %1017 = vrot.lane.b32.xlu0 %v1016, 94
    %v1018 = vpop.permute.xlu0 %1017
    %1020 = vst.msk [vmem:[#allocation3 + $0xb4] sm:$0xc] %vm261, %v1018
    %v1021 = vld [vmem:[#allocation2] sm:$0x3]
    %v1023 = vunpack.c.l.b16 %v1021
    %v1024 = vpack.c.b16 %v1023, %v1023
    %1025 = vrot.lane.b32.xlu0 %v1024, 93
    %v1026 = vpop.permute.xlu0 %1025
    %1028 = vst.msk [vmem:[#allocation3 + $0xb8] sm:$0x3] %vm255, %v1026
    %v1029 = vld [vmem:[%s257] sm:$0x3]
    %v1031 = vunpack.c.l.b16 %v1029
    %v1032 = vpack.c.b16 %v1031, %v1031
    %1033 = vrot.lane.b32.xlu0 %v1032, 93
    %v1034 = vpop.permute.xlu0 %1033
    %1036 = vst.msk [vmem:[#allocation3 + $0xbc] sm:$0x3] %vm255, %v1034
    %v1037 = vld [vmem:[#allocation2] sm:$0xc]
    %v1039 = vunpack.c.l.b16 %v1037
    %v1040 = vpack.c.b16 %v1039, %v1039
    %1041 = vrot.lane.b32.xlu0 %v1040, 93
    %v1042 = vpop.permute.xlu0 %1041
    %1044 = vst.msk [vmem:[#allocation3 + $0xb8] sm:$0xc] %vm261, %v1042
    %v1045 = vld [vmem:[%s257] sm:$0xc]
    %v1047 = vunpack.c.l.b16 %v1045
    %v1048 = vpack.c.b16 %v1047, %v1047
    %1049 = vrot.lane.b32.xlu0 %v1048, 93
    %v1050 = vpop.permute.xlu0 %1049
    %1052 = vst.msk [vmem:[#allocation3 + $0xbc] sm:$0xc] %vm261, %v1050
    %v1053 = vld [vmem:[#allocation2] sm:$0x3]
    %v1055 = vunpack.c.l.b16 %v1053
    %v1056 = vpack.c.b16 %v1055, %v1055
    %1057 = vrot.lane.b32.xlu0 %v1056, 92
    %v1058 = vpop.permute.xlu0 %1057
    %1060 = vst.msk [vmem:[#allocation3 + $0xc0] sm:$0x3] %vm255, %v1058
    %v1061 = vld [vmem:[%s257] sm:$0x3]
    %v1063 = vunpack.c.l.b16 %v1061
    %v1064 = vpack.c.b16 %v1063, %v1063
    %1065 = vrot.lane.b32.xlu0 %v1064, 92
    %v1066 = vpop.permute.xlu0 %1065
    %1068 = vst.msk [vmem:[#allocation3 + $0xc4] sm:$0x3] %vm255, %v1066
    %v1069 = vld [vmem:[#allocation7] sm:$0xff]
    %v1070 = vld [vmem:[#allocation3] sm:$0xff]
    %v1071 = vld [vmem:[#allocation3 + $0x8] sm:$0xff]
    %v1072 = vld [vmem:[#allocation3 + $0x10] sm:$0xff]
    %v1073 = vld [vmem:[#allocation3 + $0x18] sm:$0xff]
    %v1074 = vld [vmem:[#allocation3 + $0x20] sm:$0xff]
    %v1075 = vld [vmem:[#allocation3 + $0x28] sm:$0xff]
    %v1076 = vld [vmem:[#allocation3 + $0x30] sm:$0xff]
    %v1077 = vld [vmem:[#allocation3 + $0x38] sm:$0xff]
    %v1078 = vld [vmem:[#allocation3 + $0x40] sm:$0xff]
    %v1079 = vld [vmem:[#allocation3 + $0x48] sm:$0xff]
    %v1080 = vld [vmem:[#allocation3 + $0x50] sm:$0xff]
    %v1081 = vld [vmem:[#allocation3 + $0x58] sm:$0xff]
    %v1082 = vld [vmem:[#allocation3 + $0x60] sm:$0xff]
    %v1083 = vld [vmem:[#allocation3 + $0x68] sm:$0xff]
    %v1084 = vld [vmem:[#allocation3 + $0x70] sm:$0xff]
    %v1085 = vld [vmem:[#allocation3 + $0x78] sm:$0xff]
    %v1086 = vld [vmem:[#allocation3 + $0x80] sm:$0xff]
    %v1087 = vld [vmem:[#allocation3 + $0x88] sm:$0xff]
    %v1088 = vld [vmem:[#allocation3 + $0x90] sm:$0xff]
    %v1089 = vld [vmem:[#allocation3 + $0x98] sm:$0xff]
    %v1090 = vld [vmem:[#allocation3 + $0xa0] sm:$0xff]
    %v1091 = vld [vmem:[#allocation3 + $0xa8] sm:$0xff]
    %v1092 = vld [vmem:[#allocation3 + $0xb0] sm:$0xff]
    %v1093 = vld [vmem:[#allocation3 + $0xb8] sm:$0xff]
    %v1094 = vld [vmem:[#allocation3 + $0xc0] sm:$0x33]
    %v1096 = vunpack.c.l.b16 %v1069
    %v1097 = vunpack.c.h.b16 %v1069
    %v1098 = vpack.c.b16 %v1096, %v1096
    %v1099 = vpack.c.b16 %v1097, %v1097
    %v1126 = vunpack.c.l.b16 %v1070
    %v1127 = vunpack.c.h.b16 %v1070
    %v1128 = vunpack.c.l.b16 %v1071
    %v1129 = vunpack.c.h.b16 %v1071
    %v1130 = vunpack.c.l.b16 %v1072
    %v1131 = vunpack.c.h.b16 %v1072
    %v1132 = vunpack.c.l.b16 %v1073
    %v1133 = vunpack.c.h.b16 %v1073
    %v1134 = vunpack.c.l.b16 %v1074
    %v1135 = vunpack.c.h.b16 %v1074
    %v1136 = vunpack.c.l.b16 %v1075
    %v1137 = vunpack.c.h.b16 %v1075
    %v1138 = vunpack.c.l.b16 %v1076
    %v1139 = vunpack.c.h.b16 %v1076
    %v1140 = vunpack.c.l.b16 %v1077
    %v1141 = vunpack.c.h.b16 %v1077
    %v1142 = vunpack.c.l.b16 %v1078
    %v1143 = vunpack.c.h.b16 %v1078
    %v1144 = vunpack.c.l.b16 %v1079
    %v1145 = vunpack.c.h.b16 %v1079
    %v1146 = vunpack.c.l.b16 %v1080
    %v1147 = vunpack.c.h.b16 %v1080
    %v1148 = vunpack.c.l.b16 %v1081
    %v1149 = vunpack.c.h.b16 %v1081
    %v1150 = vunpack.c.l.b16 %v1082
    %v1151 = vunpack.c.h.b16 %v1082
    %v1152 = vunpack.c.l.b16 %v1083
    %v1153 = vunpack.c.h.b16 %v1083
    %v1154 = vunpack.c.l.b16 %v1084
    %v1155 = vunpack.c.h.b16 %v1084
    %v1156 = vunpack.c.l.b16 %v1085
    %v1157 = vunpack.c.h.b16 %v1085
    %v1158 = vunpack.c.l.b16 %v1086
    %v1159 = vunpack.c.h.b16 %v1086
    %v1160 = vunpack.c.l.b16 %v1087
    %v1161 = vunpack.c.h.b16 %v1087
    %v1162 = vunpack.c.l.b16 %v1088
    %v1163 = vunpack.c.h.b16 %v1088
    %v1164 = vunpack.c.l.b16 %v1089
    %v1165 = vunpack.c.h.b16 %v1089
    %v1166 = vunpack.c.l.b16 %v1090
    %v1167 = vunpack.c.h.b16 %v1090
    %v1168 = vunpack.c.l.b16 %v1091
    %v1169 = vunpack.c.h.b16 %v1091
    %v1170 = vunpack.c.l.b16 %v1092
    %v1171 = vunpack.c.h.b16 %v1092
    %v1172 = vunpack.c.l.b16 %v1093
    %v1173 = vunpack.c.h.b16 %v1093
    %v1174 = vunpack.c.l.b16 %v1094
    %v1175 = vunpack.c.h.b16 %v1094
    %v1176 = vpack.c.b16 %v1128, %v1126
    %v1177 = vpack.c.b16 %v1129, %v1127
    %v1178 = vpack.c.b16 %v1132, %v1130
    %v1179 = vpack.c.b16 %v1133, %v1131
    %v1180 = vpack.c.b16 %v1136, %v1134
    %v1181 = vpack.c.b16 %v1137, %v1135
    %v1182 = vpack.c.b16 %v1140, %v1138
    %v1183 = vpack.c.b16 %v1141, %v1139
    %v1184 = vpack.c.b16 %v1144, %v1142
    %v1185 = vpack.c.b16 %v1145, %v1143
    %v1186 = vpack.c.b16 %v1148, %v1146
    %v1187 = vpack.c.b16 %v1149, %v1147
    %v1188 = vpack.c.b16 %v1152, %v1150
    %v1189 = vpack.c.b16 %v1153, %v1151
    %v1190 = vpack.c.b16 %v1156, %v1154
    %v1191 = vpack.c.b16 %v1157, %v1155
    %v1192 = vpack.c.b16 %v1160, %v1158
    %v1193 = vpack.c.b16 %v1161, %v1159
    %v1194 = vpack.c.b16 %v1164, %v1162
    %v1195 = vpack.c.b16 %v1165, %v1163
    %v1196 = vpack.c.b16 %v1168, %v1166
    %v1197 = vpack.c.b16 %v1169, %v1167
    %v1198 = vpack.c.b16 %v1172, %v1170
    %v1199 = vpack.c.b16 %v1173, %v1171
    %v1200 = vpack.c.b16 %v1174, %v1174
    %v1201 = vpack.c.b16 %v1175, %v1175
    %vm1226 = vcmask 556032
    %v1228 = vsel %vm1226, %v1099, 0
    %vm1230 = vcmask 1041408
    %v1232 = vsel %vm1230, %v1200, 0
    %v1235 = vsel %vm1230, %v1201, 0
    %1237 = vmatprep.subr.bf16.mxu0 %v1177
    %1238 = vmatpush1.bf16.msra.mxu0 %v1176
    %1239 = vmatprep.subr.bf16.mxu0 %v1179
    %1240 = vmatpush1.bf16.msra.mxu0 %v1178
    %1241 = vmatprep.subr.bf16.mxu0 %v1181
    %1242 = vmatpush1.bf16.msra.mxu0 %v1180
    %1243 = vmatprep.subr.bf16.mxu0 %v1183
    %1244 = vmatpush1.bf16.msra.mxu0 %v1182
    %1245 = vmatprep.subr.bf16.mxu0 %v1185
    %1246 = vmatpush1.bf16.msra.mxu0 %v1184
    %1247 = vmatprep.subr.bf16.mxu0 %v1187
    %1248 = vmatpush1.bf16.msra.mxu0 %v1186
    %1249 = vmatprep.subr.bf16.mxu0 %v1189
    %1250 = vmatpush1.bf16.msra.mxu0 %v1188
    %1251 = vmatprep.subr.bf16.mxu0 %v1191
    %1252 = vmatpush1.bf16.msra.mxu0 %v1190
    %1253 = vmatprep.subr.bf16.mxu0 %v1193
    %1254 = vmatpush1.bf16.msra.mxu0 %v1192
    %1255 = vmatprep.subr.bf16.mxu0 %v1195
    %1256 = vmatpush1.bf16.msra.mxu0 %v1194
    %1257 = vmatprep.subr.bf16.mxu0 %v1197
    %1258 = vmatpush1.bf16.msra.mxu0 %v1196
    %1259 = vmatprep.subr.bf16.mxu0 %v1199
    %1260 = vmatpush1.bf16.msra.mxu0 %v1198
    %1261 = vmatprep.subr.bf16.mxu0 %v1235
    %1262 = vmatpush1.bf16.msra.mxu0 %v1232
    %1263 = vmatprep.subr.bf16.mxu0 0
    %1264 = vmatpush1.bf16.msra.mxu0 0
    %1265 = vmatprep.subr.bf16.mxu0 0
    %1266 = vmatpush1.bf16.msra.mxu0 0
    %1267 = vmatprep.subr.bf16.mxu0 0
    %1268 = vmatpush1.bf16.msra.mxu0 0
    %1269 = vmatprep.mubr.bf16.mxu0 %v1228
    %1270 = vmatmul.mubr.bf16.gmra.mrb[0].mxu0 %v1098
    %v1271 = vpop.f32.mrb[0].mxu0
    %v1272 = vadd.f32 0.0, %v1271
    %v1273 = vpop.f32.mrb[0].mxu0
    %v1274 = vadd.f32 0.0, %v1273
    %v1275 = vpop.f32.mrb[0].mxu0
    %v1276 = vpop.f32.mrb[0].mxu0
    %1277 = vdwg.mxu0
    %1278 = vst [vmem:[#allocation9] sm:$0xff] %v1272
    %s1279 = scalar_lea.vmem [#allocation9], 8
    %1280 = vst [vmem:[%s1279] sm:$0xff] %v1274
    // Predicated region
    $region22: #{tpu_custom_call.1} parent=1 // pred_check
      _
    $region23: #{tpu_custom_call.1} parent=1 // pred_check_branch
      %1282 = sbr.rel (0) target = $region25
    $region24: #{tpu_custom_call.1} parent=1 // pred_region
      %s1284 = ssub.s32 256, 256
      %1285 = vsyncadd [#allocation6], %s1284
      %s1286 = sshll.u32 [#allocation9], 4
      %s1287 = int_to_ptr.vmem [resolvable:$true] %s1286
      %1292 = dma.vmem_to_hbm [thread:$0]  %s1287, 256, %s3, [#allocation6], 128, 128, 8
    $region25: #{tpu_custom_call.1} parent=1 // pred_fallthru
      _
    // Predicated region
    $region26: #{tpu_custom_call.1} parent=1 // pred_check
      _
    $region27: #{tpu_custom_call.1} parent=1 // pred_check_branch
      %1294 = sbr.rel (0) target = $region29
    $region28: #{tpu_custom_call.1} parent=1 // pred_region
      %1295 = dma.done [#allocation6], 256
    $region29: #{tpu_custom_call.1} parent=1 // pred_fallthru
      _
    %1296 = vsyncpa [#allocation5], 1
    %1297 = vsyncpa [#allocation8], 1
    %1298 = vsyncpa [#allocation6], 1

</llo_original>
